<compile_context>
chip_gen: v6e
topology: v6e:2x2x1
jax: 0.10.0
libtpu: 0.0.40
codegen_flags: <defaults>
</compile_context>

<pallas_src>
import jax
import jax.numpy as jnp
from jax.experimental import pallas as pl
from jax.experimental.pallas import tpu as pltpu

NEG_INF = -1e30       # plain Python literals -> folded, no captured consts
LEAKY_SLOPE = 0.2
PAD = 128             # lane-dense feature width carried between layers


def _gat_layer(x, mask_bias, wh, wg, b_pad):
    """Dense single-head GATConv on lane-dense (N, PAD) activations."""
    h_ext = jnp.dot(x, wh, preferred_element_type=jnp.float32)    # (N, PAD)
    g = jnp.dot(x, wg, preferred_element_type=jnp.float32)        # (N, PAD)

    # e[i,j] = s_dst[i] + s_src[j], built on the MXU (contract last dims of
    # both operands) -- no single-column slices / transposes / broadcasts.
    e = jnp.einsum('ik,jk->ij', h_ext, g,
                   preferred_element_type=jnp.float32)             # (N, N)
    e = jnp.where(e > 0, e, LEAKY_SLOPE * e)                       # LeakyReLU(0.2)
    e = e + mask_bias                                              # mask non-edges

    m = jnp.max(e, axis=-1, keepdims=True)
    p = jnp.exp(e - m)                                             # masked -> 0
    denom = jnp.sum(p, axis=-1, keepdims=True)                     # > 0 (self-loops)

    # Aggregate UNNORMALIZED weights, normalize the (N, PAD) result afterwards
    # (removes a full (N, N) VPU multiply).  agg[:, PAD-1] == denom, so the
    # division restores the ones-carry column to exactly 1.0.
    agg = jnp.dot(p, h_ext, preferred_element_type=jnp.float32)    # (N, PAD)
    return agg / denom + b_pad


def graphnn_kernel(x_ref, mask_ref,
                   wh1_ref, wg1_ref, b1_ref,
                   wh2_ref, wg2_ref, b2_ref,
                   wh3_ref, wg3_ref, b3_ref,
                   out_ref):
    mask_bias = mask_ref[...]          # hoisted: shared by all three layers
    x = x_ref[...]

    x = _gat_layer(x, mask_bias, wh1_ref[...], wg1_ref[...], b1_ref[...])
    x = jnp.maximum(x, 0.0)            # F.relu (ones-carry column stays 1)
    x = _gat_layer(x, mask_bias, wh2_ref[...], wg2_ref[...], b2_ref[...])
    x = jnp.maximum(x, 0.0)            # F.relu
    x = _gat_layer(x, mask_bias, wh3_ref[...], wg3_ref[...], b3_ref[...])
    out_ref[...] = x                   # lane-dense store; head sliced outside


def _augment_layer(w, a_src, a_dst, b):
    """Pack (W, a_src, a_dst, b) into lane-dense (PAD, PAD) matrices."""
    c_in, c_out = w.shape
    wh = jnp.zeros((PAD, PAD), jnp.float32)
    wh = wh.at[:c_in, :c_out].set(w.astype(jnp.float32))
    wh = wh.at[PAD - 1, PAD - 1].set(1.0)                     # propagate ones carry
    wg = jnp.zeros((PAD, PAD), jnp.float32)
    wg = wg.at[PAD - 1, :c_out].set(a_dst[:, 0].astype(jnp.float32))   # a_dst row
    wg = wg.at[:c_in, PAD - 1].set((w @ a_src)[:, 0].astype(jnp.float32))  # s_src col
    b_pad = jnp.zeros((1, PAD), jnp.float32).at[:, :c_out].set(b.astype(jnp.float32))
    return wh, wg, b_pad


def graphnn_forward(x, adj, params):
    """params: list of 3 tuples (W, a_src, a_dst, b)."""
    n, c_in = x.shape
    c_out_last = params[-1][0].shape[1]

    # Lane-dense input: features in [0:c_in], ones carry in column PAD-1.
    x_pad = jnp.zeros((n, PAD), jnp.float32)
    x_pad = x_pad.at[:, :c_in].set(x.astype(jnp.float32))
    x_pad = x_pad.at[:, PAD - 1].set(1.0)

    # Additive attention mask, computed once and reused by all 3 layers.
    mask_bias = jnp.where(adj > 0, 0.0, NEG_INF).astype(jnp.float32)
    # TODO(synk): for N >~ 1-2K, store mask_bias in bf16 and switch to a
    # row-tiled grid with online softmax (budget for v5e's 16 MiB default
    # scoped VMEM and v7x's 64 MiB physical VMEM).

    args = [x_pad, mask_bias]
    flops = 0
    transcendentals = 0
    bytes_accessed = x_pad.size * 4 + mask_bias.size * 4
    for (w, a_s, a_d, b) in params:
        wh, wg, b_pad = _augment_layer(w, a_s, a_d, b)
        args.extend([wh, wg, b_pad])
        flops += 2 * (2 * n * PAD * PAD)     # h_ext + g projections
        flops += 2 * (2 * n * n * PAD)       # logits + aggregation matmuls
        flops += 6 * n * n                   # leaky / mask / softmax elementwise
        transcendentals += n * n             # exp
        bytes_accessed += (wh.size + wg.size + b_pad.size) * 4
    bytes_accessed += n * PAD * 4

    vmem_spec = pl.BlockSpec(memory_space=pltpu.MemorySpace.VMEM)
    out_pad = pl.pallas_call(
        graphnn_kernel,
        out_shape=jax.ShapeDtypeStruct((n, PAD), jnp.float32),
        in_specs=[vmem_spec] * len(args),
        out_specs=vmem_spec,
        cost_estimate=pl.CostEstimate(
            flops=int(flops),
            transcendentals=int(transcendentals),
            bytes_accessed=int(bytes_accessed)),
    )(*args)
    # TODO(synk): on v7x, shard dst-node row tiles across the 2 TensorCores
    # with a parallel grid (requires per-layer calls or cross-tile exchange,
    # since every layer reads all source rows).
    return out_pad[:, :c_out_last]


def init_gat_params(key, c_in, c_out):
    k1, k2, k3 = jax.random.split(key, 3)
    scale_w = 1.0 / jnp.sqrt(jnp.float32(c_in))
    w = scale_w * jax.random.normal(k1, (c_in, c_out), jnp.float32)
    a_src = 0.1 * jax.random.normal(k2, (c_out, 1), jnp.float32)
    a_dst = 0.1 * jax.random.normal(k3, (c_out, 1), jnp.float32)
    b = jnp.zeros((1, c_out), jnp.float32)
    return (w, a_src, a_dst, b)


if __name__ == "__main__":
    key = jax.random.PRNGKey(0)
    k_x, k_e1, k_e2, k_p1, k_p2, k_p3 = jax.random.split(key, 6)

    N = 128                      # number of graph nodes
    IN_CHANNELS = 8
    HIDDEN = [16, 32, 32]
    OUT_CHANNELS = 4
    E = 512                      # number of directed edges

    # Node features (data.x) and random edge_index (data.edge_index).
    x = jax.random.normal(k_x, (N, IN_CHANNELS), jnp.float32)
    src = jax.random.randint(k_e1, (E,), 0, N)
    dst = jax.random.randint(k_e2, (E,), 0, N)

    # Dense adjacency: adj[i, j] = 1 iff edge j -> i; add self-loops
    # (self-loop invariant guarantees every softmax row has a nonzero denom).
    adj = jnp.zeros((N, N), jnp.float32).at[dst, src].set(1.0)
    adj = jnp.maximum(adj, jnp.eye(N, dtype=jnp.float32))

    params = [
        init_gat_params(k_p1, IN_CHANNELS, HIDDEN[0]),   # conv1
        init_gat_params(k_p2, HIDDEN[0], HIDDEN[1]),     # conv2
        init_gat_params(k_p3, HIDDEN[1], OUT_CHANNELS),  # conv4
    ]

    out = graphnn_forward(x, adj, params)
    jax.block_until_ready(out)
    assert out.shape == (N, OUT_CHANNELS)
    print("KERNEL_OK")
</pallas_src>

<mosaic_0001>
module attributes {stable_mosaic.version = 11 : i64} {
  func.func @graphnn_kernel(%arg0: memref<128x128xf32, #tpu.memory_space<vmem>>, %arg1: memref<128x128xf32, #tpu.memory_space<vmem>>, %arg2: memref<128x128xf32, #tpu.memory_space<vmem>>, %arg3: memref<128x128xf32, #tpu.memory_space<vmem>>, %arg4: memref<1x128xf32, #tpu.memory_space<vmem>>, %arg5: memref<128x128xf32, #tpu.memory_space<vmem>>, %arg6: memref<128x128xf32, #tpu.memory_space<vmem>>, %arg7: memref<1x128xf32, #tpu.memory_space<vmem>>, %arg8: memref<128x128xf32, #tpu.memory_space<vmem>>, %arg9: memref<128x128xf32, #tpu.memory_space<vmem>>, %arg10: memref<1x128xf32, #tpu.memory_space<vmem>>, %arg11: memref<128x128xf32, #tpu.memory_space<vmem>>) attributes {dimension_semantics = [], scalar_prefetch = 0 : i64, scratch_operands = 0 : i64, tpu.core_type = #tpu.core_type<tc>} {
    %c0 = arith.constant 0 : index
    %c0_0 = arith.constant 0 : index
    %0 = vector.load %arg1[%c0, %c0_0] : memref<128x128xf32, #tpu.memory_space<vmem>>, vector<128x128xf32>
    %c0_1 = arith.constant 0 : index
    %c0_2 = arith.constant 0 : index
    %1 = vector.load %arg0[%c0_1, %c0_2] : memref<128x128xf32, #tpu.memory_space<vmem>>, vector<128x128xf32>
    %c0_3 = arith.constant 0 : index
    %c0_4 = arith.constant 0 : index
    %2 = vector.load %arg2[%c0_3, %c0_4] : memref<128x128xf32, #tpu.memory_space<vmem>>, vector<128x128xf32>
    %c0_5 = arith.constant 0 : index
    %c0_6 = arith.constant 0 : index
    %3 = vector.load %arg3[%c0_5, %c0_6] : memref<128x128xf32, #tpu.memory_space<vmem>>, vector<128x128xf32>
    %c0_7 = arith.constant 0 : index
    %c0_8 = arith.constant 0 : index
    %4 = vector.load %arg4[%c0_7, %c0_8] : memref<1x128xf32, #tpu.memory_space<vmem>>, vector<1x128xf32>
    %cst = arith.constant dense<0.000000e+00> : vector<128x128xf32>
    %5 = tpu.matmul %1, %2, %cst {dimension_numbers = #tpu.dot_dimension_numbers<[1], [0], [0], [1], [0, 0, 1, 1], [], []>} : vector<128x128xf32>, vector<128x128xf32>, vector<128x128xf32> -> vector<128x128xf32>
    %cst_9 = arith.constant dense<0.000000e+00> : vector<128x128xf32>
    %6 = tpu.matmul %1, %3, %cst_9 {dimension_numbers = #tpu.dot_dimension_numbers<[1], [0], [0], [1], [0, 0, 1, 1], [], []>} : vector<128x128xf32>, vector<128x128xf32>, vector<128x128xf32> -> vector<128x128xf32>
    "tpu.trace_start"() <{level = 10 : i32, message = "ik,jk->ij"}> : () -> ()
    %cst_10 = arith.constant dense<0.000000e+00> : vector<128x128xf32>
    %7 = tpu.matmul %5, %6, %cst_10 {dimension_numbers = #tpu.dot_dimension_numbers<[1], [1], [0], [0], [0, 0, 1, 0], [], []>} : vector<128x128xf32>, vector<128x128xf32>, vector<128x128xf32> -> vector<128x128xf32>
    %cst_11 = arith.constant 0.000000e+00 : f32
    "tpu.trace_stop"() : () -> ()
    %8 = vector.broadcast %cst_11 : f32 to vector<128x128xf32>
    %9 = arith.cmpf ogt, %7, %8 : vector<128x128xf32>
    %cst_12 = arith.constant 2.000000e-01 : f32
    %10 = vector.broadcast %cst_12 : f32 to vector<128x128xf32>
    %11 = arith.mulf %10, %7 : vector<128x128xf32>
    %12 = arith.select %9, %7, %11 : vector<128x128xi1>, vector<128x128xf32>
    %13 = arith.addf %12, %0 : vector<128x128xf32>
    %cst_13 = arith.constant dense<0xFF800000> : vector<128xf32>
    %14 = vector.multi_reduction <maximumf>, %13, %cst_13 [1] : vector<128x128xf32> to vector<128xf32>
    %15 = vector.shape_cast %14 : vector<128xf32> to vector<128x1xf32>
    %16 = vector.broadcast %15 : vector<128x1xf32> to vector<128x128xf32>
    %17 = arith.subf %13, %16 : vector<128x128xf32>
    %18 = math.exp %17 : vector<128x128xf32>
    %cst_14 = arith.constant dense<0.000000e+00> : vector<128xf32>
    %19 = vector.multi_reduction <add>, %18, %cst_14 [1] : vector<128x128xf32> to vector<128xf32>
    %20 = vector.shape_cast %19 : vector<128xf32> to vector<128x1xf32>
    %cst_15 = arith.constant dense<0.000000e+00> : vector<128x128xf32>
    %21 = tpu.matmul %18, %5, %cst_15 {dimension_numbers = #tpu.dot_dimension_numbers<[1], [0], [0], [1], [0, 0, 1, 1], [], []>} : vector<128x128xf32>, vector<128x128xf32>, vector<128x128xf32> -> vector<128x128xf32>
    %22 = vector.broadcast %20 : vector<128x1xf32> to vector<128x128xf32>
    %23 = arith.divf %21, %22 : vector<128x128xf32>
    %24 = vector.broadcast %4 : vector<1x128xf32> to vector<128x128xf32>
    %25 = arith.addf %23, %24 : vector<128x128xf32>
    %cst_16 = arith.constant 0.000000e+00 : f32
    %26 = vector.broadcast %cst_16 : f32 to vector<128x128xf32>
    %27 = arith.maximumf %25, %26 : vector<128x128xf32>
    %c0_17 = arith.constant 0 : index
    %c0_18 = arith.constant 0 : index
    %28 = vector.load %arg5[%c0_17, %c0_18] : memref<128x128xf32, #tpu.memory_space<vmem>>, vector<128x128xf32>
    %c0_19 = arith.constant 0 : index
    %c0_20 = arith.constant 0 : index
    %29 = vector.load %arg6[%c0_19, %c0_20] : memref<128x128xf32, #tpu.memory_space<vmem>>, vector<128x128xf32>
    %c0_21 = arith.constant 0 : index
    %c0_22 = arith.constant 0 : index
    %30 = vector.load %arg7[%c0_21, %c0_22] : memref<1x128xf32, #tpu.memory_space<vmem>>, vector<1x128xf32>
    %cst_23 = arith.constant dense<0.000000e+00> : vector<128x128xf32>
    %31 = tpu.matmul %27, %28, %cst_23 {dimension_numbers = #tpu.dot_dimension_numbers<[1], [0], [0], [1], [0, 0, 1, 1], [], []>} : vector<128x128xf32>, vector<128x128xf32>, vector<128x128xf32> -> vector<128x128xf32>
    %cst_24 = arith.constant dense<0.000000e+00> : vector<128x128xf32>
    %32 = tpu.matmul %27, %29, %cst_24 {dimension_numbers = #tpu.dot_dimension_numbers<[1], [0], [0], [1], [0, 0, 1, 1], [], []>} : vector<128x128xf32>, vector<128x128xf32>, vector<128x128xf32> -> vector<128x128xf32>
    "tpu.trace_start"() <{level = 10 : i32, message = "ik,jk->ij"}> : () -> ()
    %cst_25 = arith.constant dense<0.000000e+00> : vector<128x128xf32>
    %33 = tpu.matmul %31, %32, %cst_25 {dimension_numbers = #tpu.dot_dimension_numbers<[1], [1], [0], [0], [0, 0, 1, 0], [], []>} : vector<128x128xf32>, vector<128x128xf32>, vector<128x128xf32> -> vector<128x128xf32>
    %cst_26 = arith.constant 0.000000e+00 : f32
    "tpu.trace_stop"() : () -> ()
    %34 = vector.broadcast %cst_26 : f32 to vector<128x128xf32>
    %35 = arith.cmpf ogt, %33, %34 : vector<128x128xf32>
    %cst_27 = arith.constant 2.000000e-01 : f32
    %36 = vector.broadcast %cst_27 : f32 to vector<128x128xf32>
    %37 = arith.mulf %36, %33 : vector<128x128xf32>
    %38 = arith.select %35, %33, %37 : vector<128x128xi1>, vector<128x128xf32>
    %39 = arith.addf %38, %0 : vector<128x128xf32>
    %cst_28 = arith.constant dense<0xFF800000> : vector<128xf32>
    %40 = vector.multi_reduction <maximumf>, %39, %cst_28 [1] : vector<128x128xf32> to vector<128xf32>
    %41 = vector.shape_cast %40 : vector<128xf32> to vector<128x1xf32>
    %42 = vector.broadcast %41 : vector<128x1xf32> to vector<128x128xf32>
    %43 = arith.subf %39, %42 : vector<128x128xf32>
    %44 = math.exp %43 : vector<128x128xf32>
    %cst_29 = arith.constant dense<0.000000e+00> : vector<128xf32>
    %45 = vector.multi_reduction <add>, %44, %cst_29 [1] : vector<128x128xf32> to vector<128xf32>
    %46 = vector.shape_cast %45 : vector<128xf32> to vector<128x1xf32>
    %cst_30 = arith.constant dense<0.000000e+00> : vector<128x128xf32>
    %47 = tpu.matmul %44, %31, %cst_30 {dimension_numbers = #tpu.dot_dimension_numbers<[1], [0], [0], [1], [0, 0, 1, 1], [], []>} : vector<128x128xf32>, vector<128x128xf32>, vector<128x128xf32> -> vector<128x128xf32>
    %48 = vector.broadcast %46 : vector<128x1xf32> to vector<128x128xf32>
    %49 = arith.divf %47, %48 : vector<128x128xf32>
    %50 = vector.broadcast %30 : vector<1x128xf32> to vector<128x128xf32>
    %51 = arith.addf %49, %50 : vector<128x128xf32>
    %cst_31 = arith.constant 0.000000e+00 : f32
    %52 = vector.broadcast %cst_31 : f32 to vector<128x128xf32>
    %53 = arith.maximumf %51, %52 : vector<128x128xf32>
    %c0_32 = arith.constant 0 : index
    %c0_33 = arith.constant 0 : index
    %54 = vector.load %arg8[%c0_32, %c0_33] : memref<128x128xf32, #tpu.memory_space<vmem>>, vector<128x128xf32>
    %c0_34 = arith.constant 0 : index
    %c0_35 = arith.constant 0 : index
    %55 = vector.load %arg9[%c0_34, %c0_35] : memref<128x128xf32, #tpu.memory_space<vmem>>, vector<128x128xf32>
    %c0_36 = arith.constant 0 : index
    %c0_37 = arith.constant 0 : index
    %56 = vector.load %arg10[%c0_36, %c0_37] : memref<1x128xf32, #tpu.memory_space<vmem>>, vector<1x128xf32>
    %cst_38 = arith.constant dense<0.000000e+00> : vector<128x128xf32>
    %57 = tpu.matmul %53, %54, %cst_38 {dimension_numbers = #tpu.dot_dimension_numbers<[1], [0], [0], [1], [0, 0, 1, 1], [], []>} : vector<128x128xf32>, vector<128x128xf32>, vector<128x128xf32> -> vector<128x128xf32>
    %cst_39 = arith.constant dense<0.000000e+00> : vector<128x128xf32>
    %58 = tpu.matmul %53, %55, %cst_39 {dimension_numbers = #tpu.dot_dimension_numbers<[1], [0], [0], [1], [0, 0, 1, 1], [], []>} : vector<128x128xf32>, vector<128x128xf32>, vector<128x128xf32> -> vector<128x128xf32>
    "tpu.trace_start"() <{level = 10 : i32, message = "ik,jk->ij"}> : () -> ()
    %cst_40 = arith.constant dense<0.000000e+00> : vector<128x128xf32>
    %59 = tpu.matmul %57, %58, %cst_40 {dimension_numbers = #tpu.dot_dimension_numbers<[1], [1], [0], [0], [0, 0, 1, 0], [], []>} : vector<128x128xf32>, vector<128x128xf32>, vector<128x128xf32> -> vector<128x128xf32>
    %cst_41 = arith.constant 0.000000e+00 : f32
    "tpu.trace_stop"() : () -> ()
    %60 = vector.broadcast %cst_41 : f32 to vector<128x128xf32>
    %61 = arith.cmpf ogt, %59, %60 : vector<128x128xf32>
    %cst_42 = arith.constant 2.000000e-01 : f32
    %62 = vector.broadcast %cst_42 : f32 to vector<128x128xf32>
    %63 = arith.mulf %62, %59 : vector<128x128xf32>
    %64 = arith.select %61, %59, %63 : vector<128x128xi1>, vector<128x128xf32>
    %65 = arith.addf %64, %0 : vector<128x128xf32>
    %cst_43 = arith.constant dense<0xFF800000> : vector<128xf32>
    %66 = vector.multi_reduction <maximumf>, %65, %cst_43 [1] : vector<128x128xf32> to vector<128xf32>
    %67 = vector.shape_cast %66 : vector<128xf32> to vector<128x1xf32>
    %68 = vector.broadcast %67 : vector<128x1xf32> to vector<128x128xf32>
    %69 = arith.subf %65, %68 : vector<128x128xf32>
    %70 = math.exp %69 : vector<128x128xf32>
    %cst_44 = arith.constant dense<0.000000e+00> : vector<128xf32>
    %71 = vector.multi_reduction <add>, %70, %cst_44 [1] : vector<128x128xf32> to vector<128xf32>
    %72 = vector.shape_cast %71 : vector<128xf32> to vector<128x1xf32>
    %cst_45 = arith.constant dense<0.000000e+00> : vector<128x128xf32>
    %73 = tpu.matmul %70, %57, %cst_45 {dimension_numbers = #tpu.dot_dimension_numbers<[1], [0], [0], [1], [0, 0, 1, 1], [], []>} : vector<128x128xf32>, vector<128x128xf32>, vector<128x128xf32> -> vector<128x128xf32>
    %74 = vector.broadcast %72 : vector<128x1xf32> to vector<128x128xf32>
    %75 = arith.divf %73, %74 : vector<128x128xf32>
    %76 = vector.broadcast %56 : vector<1x128xf32> to vector<128x128xf32>
    %77 = arith.addf %75, %76 : vector<128x128xf32>
    %c0_46 = arith.constant 0 : index
    %c0_47 = arith.constant 0 : index
    %78 = vector.load %arg11[%c0_46, %c0_47] : memref<128x128xf32, #tpu.memory_space<vmem>>, vector<128x128xf32>
    tpu.vector_store %arg11[%c0_46, %c0_47], %77 {strides = array<i32>} : memref<128x128xf32, #tpu.memory_space<vmem>>, vector<128x128xf32>,
    return
  }
}

</mosaic_0001>

<llo_original>
// kernel: tpu_custom_call.1
$region0: #{tpu_custom_call.1}
  #allocation0 [shape = 'u32[]', space=smem, size = 0x4, offset = 0x4, fixed_abs, tag = 'smem constant byte address 0x4 - core index']
  #allocation1 [shape = 'u32[144,128]{1,0:T(1,128)}', space=vmem, size = 0x12000, scoped, tag = 'internal scratch']
  %s0 = inlined_call_operand.hbm [shape: f32[128,128], index: 0, kind: input, shape index: {}]
  %s1 = inlined_call_operand.hbm [shape: f32[128,128], index: 1, kind: input, shape index: {}]
  %s2 = inlined_call_operand.hbm [shape: f32[128,128], index: 2, kind: input, shape index: {}]
  %s3 = inlined_call_operand.hbm [shape: f32[128,128], index: 3, kind: input, shape index: {}]
  %s4 = inlined_call_operand.vmem [shape: f32[1,128], index: 4, kind: input, shape index: {}]
  %s5 = inlined_call_operand.hbm [shape: f32[128,128], index: 5, kind: input, shape index: {}]
  %s6 = inlined_call_operand.hbm [shape: f32[128,128], index: 6, kind: input, shape index: {}]
  %s7 = inlined_call_operand.vmem [shape: f32[1,128], index: 7, kind: input, shape index: {}]
  %s8 = inlined_call_operand.hbm [shape: f32[128,128], index: 8, kind: input, shape index: {}]
  %s9 = inlined_call_operand.hbm [shape: f32[128,128], index: 9, kind: input, shape index: {}]
  %s10 = inlined_call_operand.vmem [shape: f32[1,128], index: 10, kind: input, shape index: {}]
  %s11 = inlined_call_operand.hbm [shape: f32[128,128], index: 11, kind: output, shape index: {}]
  %s12 = sld [smem:[#allocation0]]
  $region86: #{tpu_custom_call.1} parent=0
    _
  %s14 = ssub.s32 1, %s12
  %s15 = scalar_select 0, %s14, %s12
  $region1: #{tpu_custom_call.1} parent=0
    #allocation2 [shape = 'u8[65536]{0}', space=vmem, size = 0x10000, scoped, tag = 'input window, operand 0, single buffered']
    #allocation3 [shape = 's32[1]{0}', space=sflag, size = 0x4, scoped, tag = 'scoped memory for tpu_custom_call.1']
    #allocation4 [shape = 's32[1]{0}', space=sflag, size = 0x4, scoped, tag = 'scoped memory for tpu_custom_call.1']
    #allocation5 [shape = 'u8[65536]{0}', space=vmem, size = 0x10000, scoped, tag = 'input window, operand 1, single buffered']
    #allocation6 [shape = 's32[1]{0}', space=sflag, size = 0x4, scoped, tag = 'scoped memory for tpu_custom_call.1']
    #allocation7 [shape = 'u8[65536]{0}', space=vmem, size = 0x10000, scoped, tag = 'input window, operand 2, single buffered']
    #allocation8 [shape = 'u8[65536]{0}', space=vmem, size = 0x10000, scoped, tag = 'input window, operand 3, single buffered']
    #allocation9 [shape = 's32[1]{0}', space=sflag, size = 0x4, scoped, tag = 'scoped memory for tpu_custom_call.1']
    #allocation10 [shape = 'u8[65536]{0}', space=vmem, size = 0x10000, scoped, tag = 'input window, operand 5, single buffered']
    #allocation11 [shape = 'u8[65536]{0}', space=vmem, size = 0x10000, scoped, tag = 'input window, operand 6, single buffered']
    #allocation12 [shape = 's32[1]{0}', space=sflag, size = 0x4, scoped, tag = 'scoped memory for tpu_custom_call.1']
    #allocation13 [shape = 'u8[65536]{0}', space=vmem, size = 0x10000, scoped, tag = 'input window, operand 8, single buffered']
    #allocation14 [shape = 'u8[65536]{0}', space=vmem, size = 0x10000, scoped, tag = 'input window, operand 9, single buffered']
    #allocation15 [shape = 's32[1]{0}', space=sflag, size = 0x4, scoped, tag = 'scoped memory for tpu_custom_call.1']
    #allocation16 [shape = 'u8[65536]{0}', space=vmem, size = 0x10000, scoped, tag = 'output window, operand 0, single buffered']
    %16 = vsyncpa [#allocation3], 0
    %17 = vsyncpa [#allocation6], 0
    %18 = vsyncpa [#allocation9], 0
    %19 = vsyncpa [#allocation12], 0
    %20 = vsyncpa [#allocation15], 0
    %21 = vsyncpa [#allocation4], 0
    // Predicated region
    $region2: #{tpu_custom_call.1} parent=1 // pred_check
      _
    $region3: #{tpu_custom_call.1} parent=1 // pred_check_branch
      %23 = sbr.rel (0) target = $region5
    $region4: #{tpu_custom_call.1} parent=1 // pred_region
      %s25 = ssub.s32 2048, 2048
      %26 = vsyncadd [#allocation3], %s25
      %s27 = sshll.u32 [#allocation2], 4
      %s28 = int_to_ptr.vmem [resolvable:$true] %s27
      %33 = dma.hbm_to_vmem [thread:$0]  %s0, 2048, %s28, [#allocation3], 128, 128, 8
    $region5: #{tpu_custom_call.1} parent=1 // pred_fallthru
      _
    // Predicated region
    $region6: #{tpu_custom_call.1} parent=1 // pred_check
      _
    $region7: #{tpu_custom_call.1} parent=1 // pred_check_branch
      %35 = sbr.rel (0) target = $region9
    $region8: #{tpu_custom_call.1} parent=1 // pred_region
      %s37 = ssub.s32 2048, 2048
      %38 = vsyncadd [#allocation6], %s37
      %s39 = sshll.u32 [#allocation5], 4
      %s40 = int_to_ptr.vmem [resolvable:$true] %s39
      %45 = dma.hbm_to_vmem [thread:$0]  %s1, 2048, %s40, [#allocation6], 128, 128, 8
    $region9: #{tpu_custom_call.1} parent=1 // pred_fallthru
      _
    // Predicated region
    $region10: #{tpu_custom_call.1} parent=1 // pred_check
      _
    $region11: #{tpu_custom_call.1} parent=1 // pred_check_branch
      %47 = sbr.rel (0) target = $region13
    $region12: #{tpu_custom_call.1} parent=1 // pred_region
      %s49 = ssub.s32 2048, 2048
      %50 = vsyncadd [#allocation6], %s49
      %s51 = sshll.u32 [#allocation7], 4
      %s52 = int_to_ptr.vmem [resolvable:$true] %s51
      %57 = dma.hbm_to_vmem [thread:$0]  %s2, 2048, %s52, [#allocation6], 128, 128, 8
    $region13: #{tpu_custom_call.1} parent=1 // pred_fallthru
      _
    // Predicated region
    $region14: #{tpu_custom_call.1} parent=1 // pred_check
      _
    $region15: #{tpu_custom_call.1} parent=1 // pred_check_branch
      %59 = sbr.rel (0) target = $region17
    $region16: #{tpu_custom_call.1} parent=1 // pred_region
      %s61 = ssub.s32 2048, 2048
      %62 = vsyncadd [#allocation9], %s61
      %s63 = sshll.u32 [#allocation8], 4
      %s64 = int_to_ptr.vmem [resolvable:$true] %s63
      %69 = dma.hbm_to_vmem [thread:$0]  %s3, 2048, %s64, [#allocation9], 128, 128, 8
    $region17: #{tpu_custom_call.1} parent=1 // pred_fallthru
      _
    // Predicated region
    $region18: #{tpu_custom_call.1} parent=1 // pred_check
      _
    $region19: #{tpu_custom_call.1} parent=1 // pred_check_branch
      %71 = sbr.rel (0) target = $region21
    $region20: #{tpu_custom_call.1} parent=1 // pred_region
      _
    $region21: #{tpu_custom_call.1} parent=1 // pred_fallthru
      _
    // Predicated region
    $region22: #{tpu_custom_call.1} parent=1 // pred_check
      _
    $region23: #{tpu_custom_call.1} parent=1 // pred_check_branch
      %73 = sbr.rel (0) target = $region25
    $region24: #{tpu_custom_call.1} parent=1 // pred_region
      %s75 = ssub.s32 2048, 2048
      %76 = vsyncadd [#allocation9], %s75
      %s77 = sshll.u32 [#allocation10], 4
      %s78 = int_to_ptr.vmem [resolvable:$true] %s77
      %83 = dma.hbm_to_vmem [thread:$0]  %s5, 2048, %s78, [#allocation9], 128, 128, 8
    $region25: #{tpu_custom_call.1} parent=1 // pred_fallthru
      _
    // Predicated region
    $region26: #{tpu_custom_call.1} parent=1 // pred_check
      _
    $region27: #{tpu_custom_call.1} parent=1 // pred_check_branch
      %85 = sbr.rel (0) target = $region29
    $region28: #{tpu_custom_call.1} parent=1 // pred_region
      %s87 = ssub.s32 2048, 2048
      %88 = vsyncadd [#allocation12], %s87
      %s89 = sshll.u32 [#allocation11], 4
      %s90 = int_to_ptr.vmem [resolvable:$true] %s89
      %95 = dma.hbm_to_vmem [thread:$0]  %s6, 2048, %s90, [#allocation12], 128, 128, 8
    $region29: #{tpu_custom_call.1} parent=1 // pred_fallthru
      _
    // Predicated region
    $region30: #{tpu_custom_call.1} parent=1 // pred_check
      _
    $region31: #{tpu_custom_call.1} parent=1 // pred_check_branch
      %97 = sbr.rel (0) target = $region33
    $region32: #{tpu_custom_call.1} parent=1 // pred_region
      _
    $region33: #{tpu_custom_call.1} parent=1 // pred_fallthru
      _
    // Predicated region
    $region34: #{tpu_custom_call.1} parent=1 // pred_check
      _
    $region35: #{tpu_custom_call.1} parent=1 // pred_check_branch
      %99 = sbr.rel (0) target = $region37
    $region36: #{tpu_custom_call.1} parent=1 // pred_region
      %s101 = ssub.s32 2048, 2048
      %102 = vsyncadd [#allocation12], %s101
      %s103 = sshll.u32 [#allocation13], 4
      %s104 = int_to_ptr.vmem [resolvable:$true] %s103
      %109 = dma.hbm_to_vmem [thread:$0]  %s8, 2048, %s104, [#allocation12], 128, 128, 8
    $region37: #{tpu_custom_call.1} parent=1 // pred_fallthru
      _
    // Predicated region
    $region38: #{tpu_custom_call.1} parent=1 // pred_check
      _
    $region39: #{tpu_custom_call.1} parent=1 // pred_check_branch
      %111 = sbr.rel (0) target = $region41
    $region40: #{tpu_custom_call.1} parent=1 // pred_region
      %s113 = ssub.s32 2048, 2048
      %114 = vsyncadd [#allocation15], %s113
      %s115 = sshll.u32 [#allocation14], 4
      %s116 = int_to_ptr.vmem [resolvable:$true] %s115
      %121 = dma.hbm_to_vmem [thread:$0]  %s9, 2048, %s116, [#allocation15], 128, 128, 8
    $region41: #{tpu_custom_call.1} parent=1 // pred_fallthru
      _
    // Predicated region
    $region42: #{tpu_custom_call.1} parent=1 // pred_check
      _
    $region43: #{tpu_custom_call.1} parent=1 // pred_check_branch
      %123 = sbr.rel (0) target = $region45
    $region44: #{tpu_custom_call.1} parent=1 // pred_region
      _
    $region45: #{tpu_custom_call.1} parent=1 // pred_fallthru
      _
    // Predicated region
    $region46: #{tpu_custom_call.1} parent=1 // pred_check
      _
    $region47: #{tpu_custom_call.1} parent=1 // pred_check_branch
      %125 = sbr.rel (0) target = $region49
    $region48: #{tpu_custom_call.1} parent=1 // pred_region
      %126 = dma.done [#allocation3], 2048
    $region49: #{tpu_custom_call.1} parent=1 // pred_fallthru
      _
    // Predicated region
    $region50: #{tpu_custom_call.1} parent=1 // pred_check
      _
    $region51: #{tpu_custom_call.1} parent=1 // pred_check_branch
      %128 = sbr.rel (0) target = $region53
    $region52: #{tpu_custom_call.1} parent=1 // pred_region
      %129 = dma.done [#allocation6], 2048
    $region53: #{tpu_custom_call.1} parent=1 // pred_fallthru
      _
    // Predicated region
    $region54: #{tpu_custom_call.1} parent=1 // pred_check
      _
    $region55: #{tpu_custom_call.1} parent=1 // pred_check_branch
      %131 = sbr.rel (0) target = $region57
    $region56: #{tpu_custom_call.1} parent=1 // pred_region
      %132 = dma.done [#allocation6], 2048
    $region57: #{tpu_custom_call.1} parent=1 // pred_fallthru
      _
    // Predicated region
    $region58: #{tpu_custom_call.1} parent=1 // pred_check
      _
    $region59: #{tpu_custom_call.1} parent=1 // pred_check_branch
      %134 = sbr.rel (0) target = $region61
    $region60: #{tpu_custom_call.1} parent=1 // pred_region
      %135 = dma.done [#allocation9], 2048
    $region61: #{tpu_custom_call.1} parent=1 // pred_fallthru
      _
    // Predicated region
    $region62: #{tpu_custom_call.1} parent=1 // pred_check
      _
    $region63: #{tpu_custom_call.1} parent=1 // pred_check_branch
      %137 = sbr.rel (0) target = $region65
    $region64: #{tpu_custom_call.1} parent=1 // pred_region
      %138 = dma.done [#allocation9], 2048
    $region65: #{tpu_custom_call.1} parent=1 // pred_fallthru
      _
    // Predicated region
    $region66: #{tpu_custom_call.1} parent=1 // pred_check
      _
    $region67: #{tpu_custom_call.1} parent=1 // pred_check_branch
      %140 = sbr.rel (0) target = $region69
    $region68: #{tpu_custom_call.1} parent=1 // pred_region
      %141 = dma.done [#allocation12], 2048
    $region69: #{tpu_custom_call.1} parent=1 // pred_fallthru
      _
    // Predicated region
    $region70: #{tpu_custom_call.1} parent=1 // pred_check
      _
    $region71: #{tpu_custom_call.1} parent=1 // pred_check_branch
      %143 = sbr.rel (0) target = $region73
    $region72: #{tpu_custom_call.1} parent=1 // pred_region
      %144 = dma.done [#allocation12], 2048
    $region73: #{tpu_custom_call.1} parent=1 // pred_fallthru
      _
    // Predicated region
    $region74: #{tpu_custom_call.1} parent=1 // pred_check
      _
    $region75: #{tpu_custom_call.1} parent=1 // pred_check_branch
      %146 = sbr.rel (0) target = $region77
    $region76: #{tpu_custom_call.1} parent=1 // pred_region
      %147 = dma.done [#allocation15], 2048
    $region77: #{tpu_custom_call.1} parent=1 // pred_fallthru
      _
    %v148 = vld [vmem:[#allocation5] sm:$0xff]
    %v149 = vld [vmem:[#allocation5 + $0x8] sm:$0xff]
    %v150 = vld [vmem:[#allocation5 + $0x10] sm:$0xff]
    %v151 = vld [vmem:[#allocation5 + $0x18] sm:$0xff]
    %v152 = vld [vmem:[#allocation5 + $0x20] sm:$0xff]
    %v153 = vld [vmem:[#allocation5 + $0x28] sm:$0xff]
    %v154 = vld [vmem:[#allocation5 + $0x30] sm:$0xff]
    %v155 = vld [vmem:[#allocation5 + $0x38] sm:$0xff]
    %v156 = vld [vmem:[#allocation5 + $0x40] sm:$0xff]
    %v157 = vld [vmem:[#allocation5 + $0x48] sm:$0xff]
    %v158 = vld [vmem:[#allocation5 + $0x50] sm:$0xff]
    %v159 = vld [vmem:[#allocation5 + $0x58] sm:$0xff]
    %v160 = vld [vmem:[#allocation5 + $0x60] sm:$0xff]
    %v161 = vld [vmem:[#allocation5 + $0x68] sm:$0xff]
    %v162 = vld [vmem:[#allocation5 + $0x70] sm:$0xff]
    %v163 = vld [vmem:[#allocation5 + $0x78] sm:$0xff]
    %v164 = vld [vmem:[#allocation2] sm:$0xff]
    %v165 = vld [vmem:[#allocation2 + $0x8] sm:$0xff]
    %v166 = vld [vmem:[#allocation2 + $0x10] sm:$0xff]
    %v167 = vld [vmem:[#allocation2 + $0x18] sm:$0xff]
    %v168 = vld [vmem:[#allocation2 + $0x20] sm:$0xff]
    %v169 = vld [vmem:[#allocation2 + $0x28] sm:$0xff]
    %v170 = vld [vmem:[#allocation2 + $0x30] sm:$0xff]
    %v171 = vld [vmem:[#allocation2 + $0x38] sm:$0xff]
    %v172 = vld [vmem:[#allocation2 + $0x40] sm:$0xff]
    %v173 = vld [vmem:[#allocation2 + $0x48] sm:$0xff]
    %v174 = vld [vmem:[#allocation2 + $0x50] sm:$0xff]
    %v175 = vld [vmem:[#allocation2 + $0x58] sm:$0xff]
    %v176 = vld [vmem:[#allocation2 + $0x60] sm:$0xff]
    %v177 = vld [vmem:[#allocation2 + $0x68] sm:$0xff]
    %v178 = vld [vmem:[#allocation2 + $0x70] sm:$0xff]
    %v179 = vld [vmem:[#allocation2 + $0x78] sm:$0xff]
    %v180 = vld [vmem:[#allocation7] sm:$0xff]
    %v181 = vld [vmem:[#allocation7 + $0x8] sm:$0xff]
    %v182 = vld [vmem:[#allocation7 + $0x10] sm:$0xff]
    %v183 = vld [vmem:[#allocation7 + $0x18] sm:$0xff]
    %v184 = vld [vmem:[#allocation7 + $0x20] sm:$0xff]
    %v185 = vld [vmem:[#allocation7 + $0x28] sm:$0xff]
    %v186 = vld [vmem:[#allocation7 + $0x30] sm:$0xff]
    %v187 = vld [vmem:[#allocation7 + $0x38] sm:$0xff]
    %v188 = vld [vmem:[#allocation7 + $0x40] sm:$0xff]
    %v189 = vld [vmem:[#allocation7 + $0x48] sm:$0xff]
    %v190 = vld [vmem:[#allocation7 + $0x50] sm:$0xff]
    %v191 = vld [vmem:[#allocation7 + $0x58] sm:$0xff]
    %v192 = vld [vmem:[#allocation7 + $0x60] sm:$0xff]
    %v193 = vld [vmem:[#allocation7 + $0x68] sm:$0xff]
    %v194 = vld [vmem:[#allocation7 + $0x70] sm:$0xff]
    %v195 = vld [vmem:[#allocation7 + $0x78] sm:$0xff]
    %v196 = vld [vmem:[#allocation8] sm:$0xff]
    %v197 = vld [vmem:[#allocation8 + $0x8] sm:$0xff]
    %v198 = vld [vmem:[#allocation8 + $0x10] sm:$0xff]
    %v199 = vld [vmem:[#allocation8 + $0x18] sm:$0xff]
    %v200 = vld [vmem:[#allocation8 + $0x20] sm:$0xff]
    %v201 = vld [vmem:[#allocation8 + $0x28] sm:$0xff]
    %v202 = vld [vmem:[#allocation8 + $0x30] sm:$0xff]
    %v203 = vld [vmem:[#allocation8 + $0x38] sm:$0xff]
    %v204 = vld [vmem:[#allocation8 + $0x40] sm:$0xff]
    %v205 = vld [vmem:[#allocation8 + $0x48] sm:$0xff]
    %v206 = vld [vmem:[#allocation8 + $0x50] sm:$0xff]
    %v207 = vld [vmem:[#allocation8 + $0x58] sm:$0xff]
    %v208 = vld [vmem:[#allocation8 + $0x60] sm:$0xff]
    %v209 = vld [vmem:[#allocation8 + $0x68] sm:$0xff]
    %v210 = vld [vmem:[#allocation8 + $0x70] sm:$0xff]
    %v211 = vld [vmem:[#allocation8 + $0x78] sm:$0xff]
    %v212 = vld [vmem:[%s4] sm:$0x1]
    %213 = vmatprep.subr.mxu0 0.0
    %214 = vmatpush1.msra.mxu0 %v195
    %215 = vmatprep.subr.mxu0 0.0
    %216 = vmatpush1.msra.mxu0 %v194
    %217 = vmatprep.subr.mxu0 0.0
    %218 = vmatpush1.msra.mxu0 %v193
    %219 = vmatprep.subr.mxu0 0.0
    %220 = vmatpush1.msra.mxu0 %v192
    %221 = vmatprep.subr.mxu0 0.0
    %222 = vmatpush1.msra.mxu0 %v191
    %223 = vmatprep.subr.mxu0 0.0
    %224 = vmatpush1.msra.mxu0 %v190
    %225 = vmatprep.subr.mxu0 0.0
    %226 = vmatpush1.msra.mxu0 %v189
    %227 = vmatprep.subr.mxu0 0.0
    %228 = vmatpush1.msra.mxu0 %v188
    %229 = vmatprep.subr.mxu0 0.0
    %230 = vmatpush1.msra.mxu0 %v187
    %231 = vmatprep.subr.mxu0 0.0
    %232 = vmatpush1.msra.mxu0 %v186
    %233 = vmatprep.subr.mxu0 0.0
    %234 = vmatpush1.msra.mxu0 %v185
    %235 = vmatprep.subr.mxu0 0.0
    %236 = vmatpush1.msra.mxu0 %v184
    %237 = vmatprep.subr.mxu0 0.0
    %238 = vmatpush1.msra.mxu0 %v183
    %239 = vmatprep.subr.mxu0 0.0
    %240 = vmatpush1.msra.mxu0 %v182
    %241 = vmatprep.subr.mxu0 0.0
    %242 = vmatpush1.msra.mxu0 %v181
    %243 = vmatprep.subr.mxu0 0.0
    %244 = vmatpush1.msra.mxu0 %v180
    %245 = vmatprep.subr.mxu0 0.0
    %246 = vmatpush2.msra.mxu0 0.0
    %247 = vmatprep.subr.mxu0 0.0
    %248 = vmatpush2.msra.mxu0 0.0
    %249 = vmatprep.subr.mxu0 0.0
    %250 = vmatpush2.msra.mxu0 0.0
    %251 = vmatprep.subr.mxu0 0.0
    %252 = vmatpush2.msra.mxu0 0.0
    %253 = vmatprep.subr.mxu0 0.0
    %254 = vmatpush2.msra.mxu0 0.0
    %255 = vmatprep.subr.mxu0 0.0
    %256 = vmatpush2.msra.mxu0 0.0
    %257 = vmatprep.subr.mxu0 0.0
    %258 = vmatpush2.msra.mxu0 0.0
    %259 = vmatprep.subr.mxu0 0.0
    %260 = vmatpush2.msra.mxu0 0.0
    %261 = vmatprep.subr.mxu0 0.0
    %262 = vmatpush2.msra.mxu0 0.0
    %263 = vmatprep.subr.mxu0 0.0
    %264 = vmatpush2.msra.mxu0 0.0
    %265 = vmatprep.subr.mxu0 0.0
    %266 = vmatpush2.msra.mxu0 0.0
    %267 = vmatprep.subr.mxu0 0.0
    %268 = vmatpush2.msra.mxu0 0.0
    %269 = vmatprep.subr.mxu0 0.0
    %270 = vmatpush2.msra.mxu0 0.0
    %271 = vmatprep.subr.mxu0 0.0
    %272 = vmatpush2.msra.mxu0 0.0
    %273 = vmatprep.subr.mxu0 0.0
    %274 = vmatpush2.msra.mxu0 0.0
    %275 = vmatprep.subr.mxu0 0.0
    %276 = vmatpush2.msra.mxu0 0.0
    %277 = vmatprep.mubr.f32.mxu0 0.0
    %278 = vmatmul.mubr.f32.gmra.mxu0 %v164
    %v279 = vpop.f32.mrf.mxu0
    %v280 = vadd.f32 0.0, %v279
    %v281 = vpop.f32.mrf.mxu0
    %282 = vmatprep.mubr.f32.mxu0 0.0
    %283 = vmatmul.mubr.f32.gmra.mxu0 %v165
    %v284 = vpop.f32.mrf.mxu0
    %v285 = vadd.f32 0.0, %v284
    %v286 = vpop.f32.mrf.mxu0
    %287 = vmatprep.mubr.f32.mxu0 0.0
    %288 = vmatmul.mubr.f32.gmra.mxu0 %v166
    %v289 = vpop.f32.mrf.mxu0
    %v290 = vadd.f32 0.0, %v289
    %v291 = vpop.f32.mrf.mxu0
    %292 = vmatprep.mubr.f32.mxu0 0.0
    %293 = vmatmul.mubr.f32.gmra.mxu0 %v167
    %v294 = vpop.f32.mrf.mxu0
    %v295 = vadd.f32 0.0, %v294
    %v296 = vpop.f32.mrf.mxu0
    %297 = vmatprep.mubr.f32.mxu0 0.0
    %298 = vmatmul.mubr.f32.gmra.mxu0 %v168
    %v299 = vpop.f32.mrf.mxu0
    %v300 = vadd.f32 0.0, %v299
    %v301 = vpop.f32.mrf.mxu0
    %302 = vmatprep.mubr.f32.mxu0 0.0
    %303 = vmatmul.mubr.f32.gmra.mxu0 %v169
    %v304 = vpop.f32.mrf.mxu0
    %v305 = vadd.f32 0.0, %v304
    %v306 = vpop.f32.mrf.mxu0
    %307 = vmatprep.mubr.f32.mxu0 0.0
    %308 = vmatmul.mubr.f32.gmra.mxu0 %v170
    %v309 = vpop.f32.mrf.mxu0
    %v310 = vadd.f32 0.0, %v309
    %v311 = vpop.f32.mrf.mxu0
    %312 = vmatprep.mubr.f32.mxu0 0.0
    %313 = vmatmul.mubr.f32.gmra.mxu0 %v171
    %v314 = vpop.f32.mrf.mxu0
    %v315 = vadd.f32 0.0, %v314
    %v316 = vpop.f32.mrf.mxu0
    %317 = vmatprep.mubr.f32.mxu0 0.0
    %318 = vmatmul.mubr.f32.gmra.mxu0 %v172
    %v319 = vpop.f32.mrf.mxu0
    %v320 = vadd.f32 0.0, %v319
    %v321 = vpop.f32.mrf.mxu0
    %322 = vmatprep.mubr.f32.mxu0 0.0
    %323 = vmatmul.mubr.f32.gmra.mxu0 %v173
    %v324 = vpop.f32.mrf.mxu0
    %v325 = vadd.f32 0.0, %v324
    %v326 = vpop.f32.mrf.mxu0
    %327 = vmatprep.mubr.f32.mxu0 0.0
    %328 = vmatmul.mubr.f32.gmra.mxu0 %v174
    %v329 = vpop.f32.mrf.mxu0
    %v330 = vadd.f32 0.0, %v329
    %v331 = vpop.f32.mrf.mxu0
    %332 = vmatprep.mubr.f32.mxu0 0.0
    %333 = vmatmul.mubr.f32.gmra.mxu0 %v175
    %v334 = vpop.f32.mrf.mxu0
    %v335 = vadd.f32 0.0, %v334
    %v336 = vpop.f32.mrf.mxu0
    %337 = vmatprep.mubr.f32.mxu0 0.0
    %338 = vmatmul.mubr.f32.gmra.mxu0 %v176
    %v339 = vpop.f32.mrf.mxu0
    %v340 = vadd.f32 0.0, %v339
    %v341 = vpop.f32.mrf.mxu0
    %342 = vmatprep.mubr.f32.mxu0 0.0
    %343 = vmatmul.mubr.f32.gmra.mxu0 %v177
    %v344 = vpop.f32.mrf.mxu0
    %v345 = vadd.f32 0.0, %v344
    %v346 = vpop.f32.mrf.mxu0
    %347 = vmatprep.mubr.f32.mxu0 0.0
    %348 = vmatmul.mubr.f32.gmra.mxu0 %v178
    %v349 = vpop.f32.mrf.mxu0
    %v350 = vadd.f32 0.0, %v349
    %v351 = vpop.f32.mrf.mxu0
    %352 = vmatprep.mubr.f32.mxu0 0.0
    %353 = vmatmul.mubr.f32.gmra.mxu0 %v179
    %v354 = vpop.f32.mrf.mxu0
    %v355 = vadd.f32 0.0, %v354
    %v356 = vpop.f32.mrf.mxu0
    %357 = vdwg.mxu0
    %358 = vmatprep.subr.mxu0 0.0
    %359 = vmatpush1.msra.mxu0 %v211
    %360 = vmatprep.subr.mxu0 0.0
    %361 = vmatpush1.msra.mxu0 %v210
    %362 = vmatprep.subr.mxu0 0.0
    %363 = vmatpush1.msra.mxu0 %v209
    %364 = vmatprep.subr.mxu0 0.0
    %365 = vmatpush1.msra.mxu0 %v208
    %366 = vmatprep.subr.mxu0 0.0
    %367 = vmatpush1.msra.mxu0 %v207
    %368 = vmatprep.subr.mxu0 0.0
    %369 = vmatpush1.msra.mxu0 %v206
    %370 = vmatprep.subr.mxu0 0.0
    %371 = vmatpush1.msra.mxu0 %v205
    %372 = vmatprep.subr.mxu0 0.0
    %373 = vmatpush1.msra.mxu0 %v204
    %374 = vmatprep.subr.mxu0 0.0
    %375 = vmatpush1.msra.mxu0 %v203
    %376 = vmatprep.subr.mxu0 0.0
    %377 = vmatpush1.msra.mxu0 %v202
    %378 = vmatprep.subr.mxu0 0.0
    %379 = vmatpush1.msra.mxu0 %v201
    %380 = vmatprep.subr.mxu0 0.0
    %381 = vmatpush1.msra.mxu0 %v200
    %382 = vmatprep.subr.mxu0 0.0
    %383 = vmatpush1.msra.mxu0 %v199
    %384 = vmatprep.subr.mxu0 0.0
    %385 = vmatpush1.msra.mxu0 %v198
    %386 = vmatprep.subr.mxu0 0.0
    %387 = vmatpush1.msra.mxu0 %v197
    %388 = vmatprep.subr.mxu0 0.0
    %389 = vmatpush1.msra.mxu0 %v196
    %390 = vmatprep.subr.mxu0 0.0
    %391 = vmatpush2.msra.mxu0 0.0
    %392 = vmatprep.subr.mxu0 0.0
    %393 = vmatpush2.msra.mxu0 0.0
    %394 = vmatprep.subr.mxu0 0.0
    %395 = vmatpush2.msra.mxu0 0.0
    %396 = vmatprep.subr.mxu0 0.0
    %397 = vmatpush2.msra.mxu0 0.0
    %398 = vmatprep.subr.mxu0 0.0
    %399 = vmatpush2.msra.mxu0 0.0
    %400 = vmatprep.subr.mxu0 0.0
    %401 = vmatpush2.msra.mxu0 0.0
    %402 = vmatprep.subr.mxu0 0.0
    %403 = vmatpush2.msra.mxu0 0.0
    %404 = vmatprep.subr.mxu0 0.0
    %405 = vmatpush2.msra.mxu0 0.0
    %406 = vmatprep.subr.mxu0 0.0
    %407 = vmatpush2.msra.mxu0 0.0
    %408 = vmatprep.subr.mxu0 0.0
    %409 = vmatpush2.msra.mxu0 0.0
    %410 = vmatprep.subr.mxu0 0.0
    %411 = vmatpush2.msra.mxu0 0.0
    %412 = vmatprep.subr.mxu0 0.0
    %413 = vmatpush2.msra.mxu0 0.0
    %414 = vmatprep.subr.mxu0 0.0
    %415 = vmatpush2.msra.mxu0 0.0
    %416 = vmatprep.subr.mxu0 0.0
    %417 = vmatpush2.msra.mxu0 0.0
    %418 = vmatprep.subr.mxu0 0.0
    %419 = vmatpush2.msra.mxu0 0.0
    %420 = vmatprep.subr.mxu0 0.0
    %421 = vmatpush2.msra.mxu0 0.0
    %422 = vmatprep.mubr.f32.mxu0 0.0
    %423 = vmatmul.mubr.f32.gmra.mxu0 %v164
    %v424 = vpop.f32.mrf.mxu0
    %v425 = vadd.f32 0.0, %v424
    %v426 = vpop.f32.mrf.mxu0
    %427 = vmatprep.mubr.f32.mxu0 0.0
    %428 = vmatmul.mubr.f32.gmra.mxu0 %v165
    %v429 = vpop.f32.mrf.mxu0
    %v430 = vadd.f32 0.0, %v429
    %v431 = vpop.f32.mrf.mxu0
    %432 = vmatprep.mubr.f32.mxu0 0.0
    %433 = vmatmul.mubr.f32.gmra.mxu0 %v166
    %v434 = vpop.f32.mrf.mxu0
    %v435 = vadd.f32 0.0, %v434
    %v436 = vpop.f32.mrf.mxu0
    %437 = vmatprep.mubr.f32.mxu0 0.0
    %438 = vmatmul.mubr.f32.gmra.mxu0 %v167
    %v439 = vpop.f32.mrf.mxu0
    %v440 = vadd.f32 0.0, %v439
    %v441 = vpop.f32.mrf.mxu0
    %442 = vmatprep.mubr.f32.mxu0 0.0
    %443 = vmatmul.mubr.f32.gmra.mxu0 %v168
    %v444 = vpop.f32.mrf.mxu0
    %v445 = vadd.f32 0.0, %v444
    %v446 = vpop.f32.mrf.mxu0
    %447 = vmatprep.mubr.f32.mxu0 0.0
    %448 = vmatmul.mubr.f32.gmra.mxu0 %v169
    %v449 = vpop.f32.mrf.mxu0
    %v450 = vadd.f32 0.0, %v449
    %v451 = vpop.f32.mrf.mxu0
    %452 = vmatprep.mubr.f32.mxu0 0.0
    %453 = vmatmul.mubr.f32.gmra.mxu0 %v170
    %v454 = vpop.f32.mrf.mxu0
    %v455 = vadd.f32 0.0, %v454
    %v456 = vpop.f32.mrf.mxu0
    %457 = vmatprep.mubr.f32.mxu0 0.0
    %458 = vmatmul.mubr.f32.gmra.mxu0 %v171
    %v459 = vpop.f32.mrf.mxu0
    %v460 = vadd.f32 0.0, %v459
    %v461 = vpop.f32.mrf.mxu0
    %462 = vmatprep.mubr.f32.mxu0 0.0
    %463 = vmatmul.mubr.f32.gmra.mxu0 %v172
    %v464 = vpop.f32.mrf.mxu0
    %v465 = vadd.f32 0.0, %v464
    %v466 = vpop.f32.mrf.mxu0
    %467 = vmatprep.mubr.f32.mxu0 0.0
    %468 = vmatmul.mubr.f32.gmra.mxu0 %v173
    %v469 = vpop.f32.mrf.mxu0
    %v470 = vadd.f32 0.0, %v469
    %v471 = vpop.f32.mrf.mxu0
    %472 = vmatprep.mubr.f32.mxu0 0.0
    %473 = vmatmul.mubr.f32.gmra.mxu0 %v174
    %v474 = vpop.f32.mrf.mxu0
    %v475 = vadd.f32 0.0, %v474
    %v476 = vpop.f32.mrf.mxu0
    %477 = vmatprep.mubr.f32.mxu0 0.0
    %478 = vmatmul.mubr.f32.gmra.mxu0 %v175
    %v479 = vpop.f32.mrf.mxu0
    %v480 = vadd.f32 0.0, %v479
    %v481 = vpop.f32.mrf.mxu0
    %482 = vmatprep.mubr.f32.mxu0 0.0
    %483 = vmatmul.mubr.f32.gmra.mxu0 %v176
    %v484 = vpop.f32.mrf.mxu0
    %v485 = vadd.f32 0.0, %v484
    %v486 = vpop.f32.mrf.mxu0
    %487 = vmatprep.mubr.f32.mxu0 0.0
    %488 = vmatmul.mubr.f32.gmra.mxu0 %v177
    %v489 = vpop.f32.mrf.mxu0
    %v490 = vadd.f32 0.0, %v489
    %v491 = vpop.f32.mrf.mxu0
    %492 = vmatprep.mubr.f32.mxu0 0.0
    %493 = vmatmul.mubr.f32.gmra.mxu0 %v178
    %v494 = vpop.f32.mrf.mxu0
    %v495 = vadd.f32 0.0, %v494
    %v496 = vpop.f32.mrf.mxu0
    %497 = vmatprep.mubr.f32.mxu0 0.0
    %498 = vmatmul.mubr.f32.gmra.mxu0 %v179
    %v499 = vpop.f32.mrf.mxu0
    %v500 = vadd.f32 0.0, %v499
    %v501 = vpop.f32.mrf.mxu0
    %502 = vdwg.mxu0
    %503 = vmatprep.subr.mxu0 0.0
    %504 = vmatpush1.xpose.msra.mxu0 %v500
    %505 = vmatprep.subr.mxu0 0.0
    %506 = vmatpush1.xpose.msra.mxu0 %v495
    %507 = vmatprep.subr.mxu0 0.0
    %508 = vmatpush1.xpose.msra.mxu0 %v490
    %509 = vmatprep.subr.mxu0 0.0
    %510 = vmatpush1.xpose.msra.mxu0 %v485
    %511 = vmatprep.subr.mxu0 0.0
    %512 = vmatpush1.xpose.msra.mxu0 %v480
    %513 = vmatprep.subr.mxu0 0.0
    %514 = vmatpush1.xpose.msra.mxu0 %v475
    %515 = vmatprep.subr.mxu0 0.0
    %516 = vmatpush1.xpose.msra.mxu0 %v470
    %517 = vmatprep.subr.mxu0 0.0
    %518 = vmatpush1.xpose.msra.mxu0 %v465
    %519 = vmatprep.subr.mxu0 0.0
    %520 = vmatpush1.xpose.msra.mxu0 %v460
    %521 = vmatprep.subr.mxu0 0.0
    %522 = vmatpush1.xpose.msra.mxu0 %v455
    %523 = vmatprep.subr.mxu0 0.0
    %524 = vmatpush1.xpose.msra.mxu0 %v450
    %525 = vmatprep.subr.mxu0 0.0
    %526 = vmatpush1.xpose.msra.mxu0 %v445
    %527 = vmatprep.subr.mxu0 0.0
    %528 = vmatpush1.xpose.msra.mxu0 %v440
    %529 = vmatprep.subr.mxu0 0.0
    %530 = vmatpush1.xpose.msra.mxu0 %v435
    %531 = vmatprep.subr.mxu0 0.0
    %532 = vmatpush1.xpose.msra.mxu0 %v430
    %533 = vmatprep.subr.mxu0 0.0
    %534 = vmatpush1.xpose.msra.mxu0 %v425
    %535 = vmatprep.subr.mxu0 0.0
    %536 = vmatpush2.xpose.msra.mxu0 0.0
    %537 = vmatprep.subr.mxu0 0.0
    %538 = vmatpush2.xpose.msra.mxu0 0.0
    %539 = vmatprep.subr.mxu0 0.0
    %540 = vmatpush2.xpose.msra.mxu0 0.0
    %541 = vmatprep.subr.mxu0 0.0
    %542 = vmatpush2.xpose.msra.mxu0 0.0
    %543 = vmatprep.subr.mxu0 0.0
    %544 = vmatpush2.xpose.msra.mxu0 0.0
    %545 = vmatprep.subr.mxu0 0.0
    %546 = vmatpush2.xpose.msra.mxu0 0.0
    %547 = vmatprep.subr.mxu0 0.0
    %548 = vmatpush2.xpose.msra.mxu0 0.0
    %549 = vmatprep.subr.mxu0 0.0
    %550 = vmatpush2.xpose.msra.mxu0 0.0
    %551 = vmatprep.subr.mxu0 0.0
    %552 = vmatpush2.xpose.msra.mxu0 0.0
    %553 = vmatprep.subr.mxu0 0.0
    %554 = vmatpush2.xpose.msra.mxu0 0.0
    %555 = vmatprep.subr.mxu0 0.0
    %556 = vmatpush2.xpose.msra.mxu0 0.0
    %557 = vmatprep.subr.mxu0 0.0
    %558 = vmatpush2.xpose.msra.mxu0 0.0
    %559 = vmatprep.subr.mxu0 0.0
    %560 = vmatpush2.xpose.msra.mxu0 0.0
    %561 = vmatprep.subr.mxu0 0.0
    %562 = vmatpush2.xpose.msra.mxu0 0.0
    %563 = vmatprep.subr.mxu0 0.0
    %564 = vmatpush2.xpose.msra.mxu0 0.0
    %565 = vmatprep.subr.mxu0 0.0
    %566 = vmatpush2.xpose.msra.mxu0 0.0
    %567 = vmatprep.mubr.f32.mxu0 0.0
    %568 = vmatmul.mubr.f32.gmra.mxu0 %v280
    %v569 = vpop.f32.mrf.mxu0
    %v570 = vadd.f32 0.0, %v569
    %v571 = vpop.f32.mrf.mxu0
    %572 = vmatprep.mubr.f32.mxu0 0.0
    %573 = vmatmul.mubr.f32.gmra.mxu0 %v285
    %v574 = vpop.f32.mrf.mxu0
    %v575 = vadd.f32 0.0, %v574
    %v576 = vpop.f32.mrf.mxu0
    %577 = vmatprep.mubr.f32.mxu0 0.0
    %578 = vmatmul.mubr.f32.gmra.mxu0 %v290
    %v579 = vpop.f32.mrf.mxu0
    %v580 = vadd.f32 0.0, %v579
    %v581 = vpop.f32.mrf.mxu0
    %582 = vmatprep.mubr.f32.mxu0 0.0
    %583 = vmatmul.mubr.f32.gmra.mxu0 %v295
    %v584 = vpop.f32.mrf.mxu0
    %v585 = vadd.f32 0.0, %v584
    %v586 = vpop.f32.mrf.mxu0
    %587 = vmatprep.mubr.f32.mxu0 0.0
    %588 = vmatmul.mubr.f32.gmra.mxu0 %v300
    %v589 = vpop.f32.mrf.mxu0
    %v590 = vadd.f32 0.0, %v589
    %v591 = vpop.f32.mrf.mxu0
    %592 = vmatprep.mubr.f32.mxu0 0.0
    %593 = vmatmul.mubr.f32.gmra.mxu0 %v305
    %v594 = vpop.f32.mrf.mxu0
    %v595 = vadd.f32 0.0, %v594
    %v596 = vpop.f32.mrf.mxu0
    %597 = vmatprep.mubr.f32.mxu0 0.0
    %598 = vmatmul.mubr.f32.gmra.mxu0 %v310
    %v599 = vpop.f32.mrf.mxu0
    %v600 = vadd.f32 0.0, %v599
    %v601 = vpop.f32.mrf.mxu0
    %602 = vmatprep.mubr.f32.mxu0 0.0
    %603 = vmatmul.mubr.f32.gmra.mxu0 %v315
    %v604 = vpop.f32.mrf.mxu0
    %v605 = vadd.f32 0.0, %v604
    %v606 = vpop.f32.mrf.mxu0
    %607 = vmatprep.mubr.f32.mxu0 0.0
    %608 = vmatmul.mubr.f32.gmra.mxu0 %v320
    %v609 = vpop.f32.mrf.mxu0
    %v610 = vadd.f32 0.0, %v609
    %v611 = vpop.f32.mrf.mxu0
    %612 = vmatprep.mubr.f32.mxu0 0.0
    %613 = vmatmul.mubr.f32.gmra.mxu0 %v325
    %v614 = vpop.f32.mrf.mxu0
    %v615 = vadd.f32 0.0, %v614
    %v616 = vpop.f32.mrf.mxu0
    %617 = vmatprep.mubr.f32.mxu0 0.0
    %618 = vmatmul.mubr.f32.gmra.mxu0 %v330
    %v619 = vpop.f32.mrf.mxu0
    %v620 = vadd.f32 0.0, %v619
    %v621 = vpop.f32.mrf.mxu0
    %622 = vmatprep.mubr.f32.mxu0 0.0
    %623 = vmatmul.mubr.f32.gmra.mxu0 %v335
    %v624 = vpop.f32.mrf.mxu0
    %v625 = vadd.f32 0.0, %v624
    %v626 = vpop.f32.mrf.mxu0
    %627 = vmatprep.mubr.f32.mxu0 0.0
    %628 = vmatmul.mubr.f32.gmra.mxu0 %v340
    %v629 = vpop.f32.mrf.mxu0
    %v630 = vadd.f32 0.0, %v629
    %v631 = vpop.f32.mrf.mxu0
    %632 = vmatprep.mubr.f32.mxu0 0.0
    %633 = vmatmul.mubr.f32.gmra.mxu0 %v345
    %v634 = vpop.f32.mrf.mxu0
    %v635 = vadd.f32 0.0, %v634
    %v636 = vpop.f32.mrf.mxu0
    %637 = vmatprep.mubr.f32.mxu0 0.0
    %638 = vmatmul.mubr.f32.gmra.mxu0 %v350
    %v639 = vpop.f32.mrf.mxu0
    %v640 = vadd.f32 0.0, %v639
    %v641 = vpop.f32.mrf.mxu0
    %642 = vmatprep.mubr.f32.mxu0 0.0
    %643 = vmatmul.mubr.f32.gmra.mxu0 %v355
    %v644 = vpop.f32.mrf.mxu0
    %v645 = vadd.f32 0.0, %v644
    %v646 = vpop.f32.mrf.mxu0
    %647 = vdwg.mxu0
    %vm648 = vcmp.gt.f32.partialorder %v570, 0.0
    %vm649 = vcmp.gt.f32.partialorder %v575, 0.0
    %vm650 = vcmp.gt.f32.partialorder %v580, 0.0
    %vm651 = vcmp.gt.f32.partialorder %v585, 0.0
    %vm652 = vcmp.gt.f32.partialorder %v590, 0.0
    %vm653 = vcmp.gt.f32.partialorder %v595, 0.0
    %vm654 = vcmp.gt.f32.partialorder %v600, 0.0
    %vm655 = vcmp.gt.f32.partialorder %v605, 0.0
    %vm656 = vcmp.gt.f32.partialorder %v610, 0.0
    %vm657 = vcmp.gt.f32.partialorder %v615, 0.0
    %vm658 = vcmp.gt.f32.partialorder %v620, 0.0
    %vm659 = vcmp.gt.f32.partialorder %v625, 0.0
    %vm660 = vcmp.gt.f32.partialorder %v630, 0.0
    %vm661 = vcmp.gt.f32.partialorder %v635, 0.0
    %vm662 = vcmp.gt.f32.partialorder %v640, 0.0
    %vm663 = vcmp.gt.f32.partialorder %v645, 0.0
    %v664 = vmul.f32 %v570, 0.2
    %v665 = vmul.f32 %v575, 0.2
    %v666 = vmul.f32 %v580, 0.2
    %v667 = vmul.f32 %v585, 0.2
    %v668 = vmul.f32 %v590, 0.2
    %v669 = vmul.f32 %v595, 0.2
    %v670 = vmul.f32 %v600, 0.2
    %v671 = vmul.f32 %v605, 0.2
    %v672 = vmul.f32 %v610, 0.2
    %v673 = vmul.f32 %v615, 0.2
    %v674 = vmul.f32 %v620, 0.2
    %v675 = vmul.f32 %v625, 0.2
    %v676 = vmul.f32 %v630, 0.2
    %v677 = vmul.f32 %v635, 0.2
    %v678 = vmul.f32 %v640, 0.2
    %v679 = vmul.f32 %v645, 0.2
    %v680 = vsel %vm648, %v570, %v664
    %v681 = vsel %vm649, %v575, %v665
    %v682 = vsel %vm650, %v580, %v666
    %v683 = vsel %vm651, %v585, %v667
    %v684 = vsel %vm652, %v590, %v668
    %v685 = vsel %vm653, %v595, %v669
    %v686 = vsel %vm654, %v600, %v670
    %v687 = vsel %vm655, %v605, %v671
    %v688 = vsel %vm656, %v610, %v672
    %v689 = vsel %vm657, %v615, %v673
    %v690 = vsel %vm658, %v620, %v674
    %v691 = vsel %vm659, %v625, %v675
    %v692 = vsel %vm660, %v630, %v676
    %v693 = vsel %vm661, %v635, %v677
    %v694 = vsel %vm662, %v640, %v678
    %v695 = vsel %vm663, %v645, %v679
    %v696 = vadd.f32 %v680, %v148
    %v697 = vadd.f32 %v681, %v149
    %v698 = vadd.f32 %v682, %v150
    %v699 = vadd.f32 %v683, %v151
    %v700 = vadd.f32 %v684, %v152
    %v701 = vadd.f32 %v685, %v153
    %v702 = vadd.f32 %v686, %v154
    %v703 = vadd.f32 %v687, %v155
    %v704 = vadd.f32 %v688, %v156
    %v705 = vadd.f32 %v689, %v157
    %v706 = vadd.f32 %v690, %v158
    %v707 = vadd.f32 %v691, %v159
    %v708 = vadd.f32 %v692, %v160
    %v709 = vadd.f32 %v693, %v161
    %v710 = vadd.f32 %v694, %v162
    %v711 = vadd.f32 %v695, %v163
    %712 = vmax.xlane.f32.xlu0 %v696
    %v713 = vpop.xlane.xlu0 %712
    %714 = vmax.xlane.f32.xlu0 %v697
    %v715 = vpop.xlane.xlu0 %714
    %716 = vmax.xlane.f32.xlu0 %v698
    %v717 = vpop.xlane.xlu0 %716
    %718 = vmax.xlane.f32.xlu0 %v699
    %v719 = vpop.xlane.xlu0 %718
    %720 = vmax.xlane.f32.xlu0 %v700
    %v721 = vpop.xlane.xlu0 %720
    %722 = vmax.xlane.f32.xlu0 %v701
    %v723 = vpop.xlane.xlu0 %722
    %724 = vmax.xlane.f32.xlu0 %v702
    %v725 = vpop.xlane.xlu0 %724
    %726 = vmax.xlane.f32.xlu0 %v703
    %v727 = vpop.xlane.xlu0 %726
    %728 = vmax.xlane.f32.xlu0 %v704
    %v729 = vpop.xlane.xlu0 %728
    %730 = vmax.xlane.f32.xlu0 %v705
    %v731 = vpop.xlane.xlu0 %730
    %732 = vmax.xlane.f32.xlu0 %v706
    %v733 = vpop.xlane.xlu0 %732
    %734 = vmax.xlane.f32.xlu0 %v707
    %v735 = vpop.xlane.xlu0 %734
    %736 = vmax.xlane.f32.xlu0 %v708
    %v737 = vpop.xlane.xlu0 %736
    %738 = vmax.xlane.f32.xlu0 %v709
    %v739 = vpop.xlane.xlu0 %738
    %740 = vmax.xlane.f32.xlu0 %v710
    %v741 = vpop.xlane.xlu0 %740
    %742 = vmax.xlane.f32.xlu0 %v711
    %v743 = vpop.xlane.xlu0 %742
    %v744 = vsub.f32 %v696, %v713
    %v745 = vsub.f32 %v697, %v715
    %v746 = vsub.f32 %v698, %v717
    %v747 = vsub.f32 %v699, %v719
    %v748 = vsub.f32 %v700, %v721
    %v749 = vsub.f32 %v701, %v723
    %v750 = vsub.f32 %v702, %v725
    %v751 = vsub.f32 %v703, %v727
    %v752 = vsub.f32 %v704, %v729
    %v753 = vsub.f32 %v705, %v731
    %v754 = vsub.f32 %v706, %v733
    %v755 = vsub.f32 %v707, %v735
    %v756 = vsub.f32 %v708, %v737
    %v757 = vsub.f32 %v709, %v739
    %v758 = vsub.f32 %v710, %v741
    %v759 = vsub.f32 %v711, %v743
    %v760 = vmul.f32 %v744, 1.442695
    %v761 = vpow.pop %v760
    %v762 = vmul.f32 %v745, 1.442695
    %v763 = vpow.pop %v762
    %v764 = vmul.f32 %v746, 1.442695
    %v765 = vpow.pop %v764
    %v766 = vmul.f32 %v747, 1.442695
    %v767 = vpow.pop %v766
    %v768 = vmul.f32 %v748, 1.442695
    %v769 = vpow.pop %v768
    %v770 = vmul.f32 %v749, 1.442695
    %v771 = vpow.pop %v770
    %v772 = vmul.f32 %v750, 1.442695
    %v773 = vpow.pop %v772
    %v774 = vmul.f32 %v751, 1.442695
    %v775 = vpow.pop %v774
    %v776 = vmul.f32 %v752, 1.442695
    %v777 = vpow.pop %v776
    %v778 = vmul.f32 %v753, 1.442695
    %v779 = vpow.pop %v778
    %v780 = vmul.f32 %v754, 1.442695
    %v781 = vpow.pop %v780
    %v782 = vmul.f32 %v755, 1.442695
    %v783 = vpow.pop %v782
    %v784 = vmul.f32 %v756, 1.442695
    %v785 = vpow.pop %v784
    %v786 = vmul.f32 %v757, 1.442695
    %v787 = vpow.pop %v786
    %v788 = vmul.f32 %v758, 1.442695
    %v789 = vpow.pop %v788
    %v790 = vmul.f32 %v759, 1.442695
    %v791 = vpow.pop %v790
    %792 = vadd.xlane.f32.xlu0 %v761
    %v793 = vpop.xlane.xlu0 %792
    %794 = vadd.xlane.f32.xlu0 %v763
    %v795 = vpop.xlane.xlu0 %794
    %796 = vadd.xlane.f32.xlu0 %v765
    %v797 = vpop.xlane.xlu0 %796
    %798 = vadd.xlane.f32.xlu0 %v767
    %v799 = vpop.xlane.xlu0 %798
    %800 = vadd.xlane.f32.xlu0 %v769
    %v801 = vpop.xlane.xlu0 %800
    %802 = vadd.xlane.f32.xlu0 %v771
    %v803 = vpop.xlane.xlu0 %802
    %804 = vadd.xlane.f32.xlu0 %v773
    %v805 = vpop.xlane.xlu0 %804
    %806 = vadd.xlane.f32.xlu0 %v775
    %v807 = vpop.xlane.xlu0 %806
    %808 = vadd.xlane.f32.xlu0 %v777
    %v809 = vpop.xlane.xlu0 %808
    %810 = vadd.xlane.f32.xlu0 %v779
    %v811 = vpop.xlane.xlu0 %810
    %812 = vadd.xlane.f32.xlu0 %v781
    %v813 = vpop.xlane.xlu0 %812
    %814 = vadd.xlane.f32.xlu0 %v783
    %v815 = vpop.xlane.xlu0 %814
    %816 = vadd.xlane.f32.xlu0 %v785
    %v817 = vpop.xlane.xlu0 %816
    %818 = vadd.xlane.f32.xlu0 %v787
    %v819 = vpop.xlane.xlu0 %818
    %820 = vadd.xlane.f32.xlu0 %v789
    %v821 = vpop.xlane.xlu0 %820
    %822 = vadd.xlane.f32.xlu0 %v791
    %v823 = vpop.xlane.xlu0 %822
    %824 = vmatprep.subr.mxu0 0.0
    %825 = vmatpush1.msra.mxu0 %v355
    %826 = vmatprep.subr.mxu0 0.0
    %827 = vmatpush1.msra.mxu0 %v350
    %828 = vmatprep.subr.mxu0 0.0
    %829 = vmatpush1.msra.mxu0 %v345
    %830 = vmatprep.subr.mxu0 0.0
    %831 = vmatpush1.msra.mxu0 %v340
    %832 = vmatprep.subr.mxu0 0.0
    %833 = vmatpush1.msra.mxu0 %v335
    %834 = vmatprep.subr.mxu0 0.0
    %835 = vmatpush1.msra.mxu0 %v330
    %836 = vmatprep.subr.mxu0 0.0
    %837 = vmatpush1.msra.mxu0 %v325
    %838 = vmatprep.subr.mxu0 0.0
    %839 = vmatpush1.msra.mxu0 %v320
    %840 = vmatprep.subr.mxu0 0.0
    %841 = vmatpush1.msra.mxu0 %v315
    %842 = vmatprep.subr.mxu0 0.0
    %843 = vmatpush1.msra.mxu0 %v310
    %844 = vmatprep.subr.mxu0 0.0
    %845 = vmatpush1.msra.mxu0 %v305
    %846 = vmatprep.subr.mxu0 0.0
    %847 = vmatpush1.msra.mxu0 %v300
    %848 = vmatprep.subr.mxu0 0.0
    %849 = vmatpush1.msra.mxu0 %v295
    %850 = vmatprep.subr.mxu0 0.0
    %851 = vmatpush1.msra.mxu0 %v290
    %852 = vmatprep.subr.mxu0 0.0
    %853 = vmatpush1.msra.mxu0 %v285
    %854 = vmatprep.subr.mxu0 0.0
    %855 = vmatpush1.msra.mxu0 %v280
    %856 = vmatprep.subr.mxu0 0.0
    %857 = vmatpush2.msra.mxu0 0.0
    %858 = vmatprep.subr.mxu0 0.0
    %859 = vmatpush2.msra.mxu0 0.0
    %860 = vmatprep.subr.mxu0 0.0
    %861 = vmatpush2.msra.mxu0 0.0
    %862 = vmatprep.subr.mxu0 0.0
    %863 = vmatpush2.msra.mxu0 0.0
    %864 = vmatprep.subr.mxu0 0.0
    %865 = vmatpush2.msra.mxu0 0.0
    %866 = vmatprep.subr.mxu0 0.0
    %867 = vmatpush2.msra.mxu0 0.0
    %868 = vmatprep.subr.mxu0 0.0
    %869 = vmatpush2.msra.mxu0 0.0
    %870 = vmatprep.subr.mxu0 0.0
    %871 = vmatpush2.msra.mxu0 0.0
    %872 = vmatprep.subr.mxu0 0.0
    %873 = vmatpush2.msra.mxu0 0.0
    %874 = vmatprep.subr.mxu0 0.0
    %875 = vmatpush2.msra.mxu0 0.0
    %876 = vmatprep.subr.mxu0 0.0
    %877 = vmatpush2.msra.mxu0 0.0
    %878 = vmatprep.subr.mxu0 0.0
    %879 = vmatpush2.msra.mxu0 0.0
    %880 = vmatprep.subr.mxu0 0.0
    %881 = vmatpush2.msra.mxu0 0.0
    %882 = vmatprep.subr.mxu0 0.0
    %883 = vmatpush2.msra.mxu0 0.0
    %884 = vmatprep.subr.mxu0 0.0
    %885 = vmatpush2.msra.mxu0 0.0
    %886 = vmatprep.subr.mxu0 0.0
    %887 = vmatpush2.msra.mxu0 0.0
    %888 = vmatprep.mubr.f32.mxu0 0.0
    %889 = vmatmul.mubr.f32.gmra.mxu0 %v761
    %v890 = vpop.f32.mrf.mxu0
    %v891 = vadd.f32 0.0, %v890
    %v892 = vpop.f32.mrf.mxu0
    %893 = vmatprep.mubr.f32.mxu0 0.0
    %894 = vmatmul.mubr.f32.gmra.mxu0 %v763
    %v895 = vpop.f32.mrf.mxu0
    %v896 = vadd.f32 0.0, %v895
    %v897 = vpop.f32.mrf.mxu0
    %898 = vmatprep.mubr.f32.mxu0 0.0
    %899 = vmatmul.mubr.f32.gmra.mxu0 %v765
    %v900 = vpop.f32.mrf.mxu0
    %v901 = vadd.f32 0.0, %v900
    %v902 = vpop.f32.mrf.mxu0
    %903 = vmatprep.mubr.f32.mxu0 0.0
    %904 = vmatmul.mubr.f32.gmra.mxu0 %v767
    %v905 = vpop.f32.mrf.mxu0
    %v906 = vadd.f32 0.0, %v905
    %v907 = vpop.f32.mrf.mxu0
    %908 = vmatprep.mubr.f32.mxu0 0.0
    %909 = vmatmul.mubr.f32.gmra.mxu0 %v769
    %v910 = vpop.f32.mrf.mxu0
    %v911 = vadd.f32 0.0, %v910
    %v912 = vpop.f32.mrf.mxu0
    %913 = vmatprep.mubr.f32.mxu0 0.0
    %914 = vmatmul.mubr.f32.gmra.mxu0 %v771
    %v915 = vpop.f32.mrf.mxu0
    %v916 = vadd.f32 0.0, %v915
    %v917 = vpop.f32.mrf.mxu0
    %918 = vmatprep.mubr.f32.mxu0 0.0
    %919 = vmatmul.mubr.f32.gmra.mxu0 %v773
    %v920 = vpop.f32.mrf.mxu0
    %v921 = vadd.f32 0.0, %v920
    %v922 = vpop.f32.mrf.mxu0
    %923 = vmatprep.mubr.f32.mxu0 0.0
    %924 = vmatmul.mubr.f32.gmra.mxu0 %v775
    %v925 = vpop.f32.mrf.mxu0
    %v926 = vadd.f32 0.0, %v925
    %v927 = vpop.f32.mrf.mxu0
    %928 = vmatprep.mubr.f32.mxu0 0.0
    %929 = vmatmul.mubr.f32.gmra.mxu0 %v777
    %v930 = vpop.f32.mrf.mxu0
    %v931 = vadd.f32 0.0, %v930
    %v932 = vpop.f32.mrf.mxu0
    %933 = vmatprep.mubr.f32.mxu0 0.0
    %934 = vmatmul.mubr.f32.gmra.mxu0 %v779
    %v935 = vpop.f32.mrf.mxu0
    %v936 = vadd.f32 0.0, %v935
    %v937 = vpop.f32.mrf.mxu0
    %938 = vmatprep.mubr.f32.mxu0 0.0
    %939 = vmatmul.mubr.f32.gmra.mxu0 %v781
    %v940 = vpop.f32.mrf.mxu0
    %v941 = vadd.f32 0.0, %v940
    %v942 = vpop.f32.mrf.mxu0
    %943 = vmatprep.mubr.f32.mxu0 0.0
    %944 = vmatmul.mubr.f32.gmra.mxu0 %v783
    %v945 = vpop.f32.mrf.mxu0
    %v946 = vadd.f32 0.0, %v945
    %v947 = vpop.f32.mrf.mxu0
    %948 = vmatprep.mubr.f32.mxu0 0.0
    %949 = vmatmul.mubr.f32.gmra.mxu0 %v785
    %v950 = vpop.f32.mrf.mxu0
    %v951 = vadd.f32 0.0, %v950
    %v952 = vpop.f32.mrf.mxu0
    %953 = vmatprep.mubr.f32.mxu0 0.0
    %954 = vmatmul.mubr.f32.gmra.mxu0 %v787
    %v955 = vpop.f32.mrf.mxu0
    %v956 = vadd.f32 0.0, %v955
    %v957 = vpop.f32.mrf.mxu0
    %958 = vmatprep.mubr.f32.mxu0 0.0
    %959 = vmatmul.mubr.f32.gmra.mxu0 %v789
    %v960 = vpop.f32.mrf.mxu0
    %v961 = vadd.f32 0.0, %v960
    %v962 = vpop.f32.mrf.mxu0
    %963 = vmatprep.mubr.f32.mxu0 0.0
    %964 = vmatmul.mubr.f32.gmra.mxu0 %v791
    %v965 = vpop.f32.mrf.mxu0
    %v966 = vadd.f32 0.0, %v965
    %v967 = vpop.f32.mrf.mxu0
    %968 = vdwg.mxu0
    %v969 = vrcp.pop %v793
    %v970 = vmul.f32 %v891, %v969
    %v971 = vrcp.pop %v795
    %v972 = vmul.f32 %v896, %v971
    %v973 = vrcp.pop %v797
    %v974 = vmul.f32 %v901, %v973
    %v975 = vrcp.pop %v799
    %v976 = vmul.f32 %v906, %v975
    %v977 = vrcp.pop %v801
    %v978 = vmul.f32 %v911, %v977
    %v979 = vrcp.pop %v803
    %v980 = vmul.f32 %v916, %v979
    %v981 = vrcp.pop %v805
    %v982 = vmul.f32 %v921, %v981
    %v983 = vrcp.pop %v807
    %v984 = vmul.f32 %v926, %v983
    %v985 = vrcp.pop %v809
    %v986 = vmul.f32 %v931, %v985
    %v987 = vrcp.pop %v811
    %v988 = vmul.f32 %v936, %v987
    %v989 = vrcp.pop %v813
    %v990 = vmul.f32 %v941, %v989
    %v991 = vrcp.pop %v815
    %v992 = vmul.f32 %v946, %v991
    %v993 = vrcp.pop %v817
    %v994 = vmul.f32 %v951, %v993
    %v995 = vrcp.pop %v819
    %v996 = vmul.f32 %v956, %v995
    %v997 = vrcp.pop %v821
    %v998 = vmul.f32 %v961, %v997
    %v999 = vrcp.pop %v823
    %v1000 = vmul.f32 %v966, %v999
    %v1002 = vlaneseq
    %v1003 = vshrl.u32 %v1002, 7
    %v1004 = vsub.s32 0, %v1003
    %v1005 = vrot.slane %v212, %v1004
    %v1007 = vadd.f32 %v970, %v1005
    %v1008 = vadd.f32 %v972, %v1005
    %v1009 = vadd.f32 %v974, %v1005
    %v1010 = vadd.f32 %v976, %v1005
    %v1011 = vadd.f32 %v978, %v1005
    %v1012 = vadd.f32 %v980, %v1005
    %v1013 = vadd.f32 %v982, %v1005
    %v1014 = vadd.f32 %v984, %v1005
    %v1015 = vadd.f32 %v986, %v1005
    %v1016 = vadd.f32 %v988, %v1005
    %v1017 = vadd.f32 %v990, %v1005
    %v1018 = vadd.f32 %v992, %v1005
    %v1019 = vadd.f32 %v994, %v1005
    %v1020 = vadd.f32 %v996, %v1005
    %v1021 = vadd.f32 %v998, %v1005
    %v1022 = vadd.f32 %v1000, %v1005
    %v1023 = vmax.f32 %v1007, 0.0
    %v1024 = vmax.f32 %v1008, 0.0
    %v1025 = vmax.f32 %v1009, 0.0
    %v1026 = vmax.f32 %v1010, 0.0
    %v1027 = vmax.f32 %v1011, 0.0
    %v1028 = vmax.f32 %v1012, 0.0
    %v1029 = vmax.f32 %v1013, 0.0
    %v1030 = vmax.f32 %v1014, 0.0
    %v1031 = vmax.f32 %v1015, 0.0
    %v1032 = vmax.f32 %v1016, 0.0
    %v1033 = vmax.f32 %v1017, 0.0
    %v1034 = vmax.f32 %v1018, 0.0
    %v1035 = vmax.f32 %v1019, 0.0
    %v1036 = vmax.f32 %v1020, 0.0
    %v1037 = vmax.f32 %v1021, 0.0
    %v1038 = vmax.f32 %v1022, 0.0
    %v1039 = vld [vmem:[#allocation10] sm:$0xff]
    %v1040 = vld [vmem:[#allocation10 + $0x8] sm:$0xff]
    %v1041 = vld [vmem:[#allocation10 + $0x10] sm:$0xff]
    %v1042 = vld [vmem:[#allocation10 + $0x18] sm:$0xff]
    %v1043 = vld [vmem:[#allocation10 + $0x20] sm:$0xff]
    %v1044 = vld [vmem:[#allocation10 + $0x28] sm:$0xff]
    %v1045 = vld [vmem:[#allocation10 + $0x30] sm:$0xff]
    %v1046 = vld [vmem:[#allocation10 + $0x38] sm:$0xff]
    %v1047 = vld [vmem:[#allocation10 + $0x40] sm:$0xff]
    %v1048 = vld [vmem:[#allocation10 + $0x48] sm:$0xff]
    %v1049 = vld [vmem:[#allocation10 + $0x50] sm:$0xff]
    %v1050 = vld [vmem:[#allocation10 + $0x58] sm:$0xff]
    %v1051 = vld [vmem:[#allocation10 + $0x60] sm:$0xff]
    %v1052 = vld [vmem:[#allocation10 + $0x68] sm:$0xff]
    %v1053 = vld [vmem:[#allocation10 + $0x70] sm:$0xff]
    %v1054 = vld [vmem:[#allocation10 + $0x78] sm:$0xff]
    %v1055 = vld [vmem:[#allocation11] sm:$0xff]
    %v1056 = vld [vmem:[#allocation11 + $0x8] sm:$0xff]
    %v1057 = vld [vmem:[#allocation11 + $0x10] sm:$0xff]
    %v1058 = vld [vmem:[#allocation11 + $0x18] sm:$0xff]
    %v1059 = vld [vmem:[#allocation11 + $0x20] sm:$0xff]
    %v1060 = vld [vmem:[#allocation11 + $0x28] sm:$0xff]
    %v1061 = vld [vmem:[#allocation11 + $0x30] sm:$0xff]
    %v1062 = vld [vmem:[#allocation11 + $0x38] sm:$0xff]
    %v1063 = vld [vmem:[#allocation11 + $0x40] sm:$0xff]
    %v1064 = vld [vmem:[#allocation11 + $0x48] sm:$0xff]
    %v1065 = vld [vmem:[#allocation11 + $0x50] sm:$0xff]
    %v1066 = vld [vmem:[#allocation11 + $0x58] sm:$0xff]
    %v1067 = vld [vmem:[#allocation11 + $0x60] sm:$0xff]
    %v1068 = vld [vmem:[#allocation11 + $0x68] sm:$0xff]
    %v1069 = vld [vmem:[#allocation11 + $0x70] sm:$0xff]
    %v1070 = vld [vmem:[#allocation11 + $0x78] sm:$0xff]
    %v1071 = vld [vmem:[%s7] sm:$0x1]
    %1072 = vmatprep.subr.mxu0 0.0
    %1073 = vmatpush1.msra.mxu0 %v1054
    %1074 = vmatprep.subr.mxu0 0.0
    %1075 = vmatpush1.msra.mxu0 %v1053
    %1076 = vmatprep.subr.mxu0 0.0
    %1077 = vmatpush1.msra.mxu0 %v1052
    %1078 = vmatprep.subr.mxu0 0.0
    %1079 = vmatpush1.msra.mxu0 %v1051
    %1080 = vmatprep.subr.mxu0 0.0
    %1081 = vmatpush1.msra.mxu0 %v1050
    %1082 = vmatprep.subr.mxu0 0.0
    %1083 = vmatpush1.msra.mxu0 %v1049
    %1084 = vmatprep.subr.mxu0 0.0
    %1085 = vmatpush1.msra.mxu0 %v1048
    %1086 = vmatprep.subr.mxu0 0.0
    %1087 = vmatpush1.msra.mxu0 %v1047
    %1088 = vmatprep.subr.mxu0 0.0
    %1089 = vmatpush1.msra.mxu0 %v1046
    %1090 = vmatprep.subr.mxu0 0.0
    %1091 = vmatpush1.msra.mxu0 %v1045
    %1092 = vmatprep.subr.mxu0 0.0
    %1093 = vmatpush1.msra.mxu0 %v1044
    %1094 = vmatprep.subr.mxu0 0.0
    %1095 = vmatpush1.msra.mxu0 %v1043
    %1096 = vmatprep.subr.mxu0 0.0
    %1097 = vmatpush1.msra.mxu0 %v1042
    %1098 = vmatprep.subr.mxu0 0.0
    %1099 = vmatpush1.msra.mxu0 %v1041
    %1100 = vmatprep.subr.mxu0 0.0
    %1101 = vmatpush1.msra.mxu0 %v1040
    %1102 = vmatprep.subr.mxu0 0.0
    %1103 = vmatpush1.msra.mxu0 %v1039
    %1104 = vmatprep.subr.mxu0 0.0
    %1105 = vmatpush2.msra.mxu0 0.0
    %1106 = vmatprep.subr.mxu0 0.0
    %1107 = vmatpush2.msra.mxu0 0.0
    %1108 = vmatprep.subr.mxu0 0.0
    %1109 = vmatpush2.msra.mxu0 0.0
    %1110 = vmatprep.subr.mxu0 0.0
    %1111 = vmatpush2.msra.mxu0 0.0
    %1112 = vmatprep.subr.mxu0 0.0
    %1113 = vmatpush2.msra.mxu0 0.0
    %1114 = vmatprep.subr.mxu0 0.0
    %1115 = vmatpush2.msra.mxu0 0.0
    %1116 = vmatprep.subr.mxu0 0.0
    %1117 = vmatpush2.msra.mxu0 0.0
    %1118 = vmatprep.subr.mxu0 0.0
    %1119 = vmatpush2.msra.mxu0 0.0
    %1120 = vmatprep.subr.mxu0 0.0
    %1121 = vmatpush2.msra.mxu0 0.0
    %1122 = vmatprep.subr.mxu0 0.0
    %1123 = vmatpush2.msra.mxu0 0.0
    %1124 = vmatprep.subr.mxu0 0.0
    %1125 = vmatpush2.msra.mxu0 0.0
    %1126 = vmatprep.subr.mxu0 0.0
    %1127 = vmatpush2.msra.mxu0 0.0
    %1128 = vmatprep.subr.mxu0 0.0
    %1129 = vmatpush2.msra.mxu0 0.0
    %1130 = vmatprep.subr.mxu0 0.0
    %1131 = vmatpush2.msra.mxu0 0.0
    %1132 = vmatprep.subr.mxu0 0.0
    %1133 = vmatpush2.msra.mxu0 0.0
    %1134 = vmatprep.subr.mxu0 0.0
    %1135 = vmatpush2.msra.mxu0 0.0
    %1136 = vmatprep.mubr.f32.mxu0 0.0
    %1137 = vmatmul.mubr.f32.gmra.mxu0 %v1023
    %v1138 = vpop.f32.mrf.mxu0
    %v1139 = vadd.f32 0.0, %v1138
    %v1140 = vpop.f32.mrf.mxu0
    %1141 = vmatprep.mubr.f32.mxu0 0.0
    %1142 = vmatmul.mubr.f32.gmra.mxu0 %v1024
    %v1143 = vpop.f32.mrf.mxu0
    %v1144 = vadd.f32 0.0, %v1143
    %v1145 = vpop.f32.mrf.mxu0
    %1146 = vmatprep.mubr.f32.mxu0 0.0
    %1147 = vmatmul.mubr.f32.gmra.mxu0 %v1025
    %v1148 = vpop.f32.mrf.mxu0
    %v1149 = vadd.f32 0.0, %v1148
    %v1150 = vpop.f32.mrf.mxu0
    %1151 = vmatprep.mubr.f32.mxu0 0.0
    %1152 = vmatmul.mubr.f32.gmra.mxu0 %v1026
    %v1153 = vpop.f32.mrf.mxu0
    %v1154 = vadd.f32 0.0, %v1153
    %v1155 = vpop.f32.mrf.mxu0
    %1156 = vmatprep.mubr.f32.mxu0 0.0
    %1157 = vmatmul.mubr.f32.gmra.mxu0 %v1027
    %v1158 = vpop.f32.mrf.mxu0
    %v1159 = vadd.f32 0.0, %v1158
    %v1160 = vpop.f32.mrf.mxu0
    %1161 = vmatprep.mubr.f32.mxu0 0.0
    %1162 = vmatmul.mubr.f32.gmra.mxu0 %v1028
    %v1163 = vpop.f32.mrf.mxu0
    %v1164 = vadd.f32 0.0, %v1163
    %v1165 = vpop.f32.mrf.mxu0
    %1166 = vmatprep.mubr.f32.mxu0 0.0
    %1167 = vmatmul.mubr.f32.gmra.mxu0 %v1029
    %v1168 = vpop.f32.mrf.mxu0
    %v1169 = vadd.f32 0.0, %v1168
    %v1170 = vpop.f32.mrf.mxu0
    %1171 = vmatprep.mubr.f32.mxu0 0.0
    %1172 = vmatmul.mubr.f32.gmra.mxu0 %v1030
    %v1173 = vpop.f32.mrf.mxu0
    %v1174 = vadd.f32 0.0, %v1173
    %v1175 = vpop.f32.mrf.mxu0
    %1176 = vmatprep.mubr.f32.mxu0 0.0
    %1177 = vmatmul.mubr.f32.gmra.mxu0 %v1031
    %v1178 = vpop.f32.mrf.mxu0
    %v1179 = vadd.f32 0.0, %v1178
    %v1180 = vpop.f32.mrf.mxu0
    %1181 = vmatprep.mubr.f32.mxu0 0.0
    %1182 = vmatmul.mubr.f32.gmra.mxu0 %v1032
    %v1183 = vpop.f32.mrf.mxu0
    %v1184 = vadd.f32 0.0, %v1183
    %v1185 = vpop.f32.mrf.mxu0
    %1186 = vmatprep.mubr.f32.mxu0 0.0
    %1187 = vmatmul.mubr.f32.gmra.mxu0 %v1033
    %v1188 = vpop.f32.mrf.mxu0
    %v1189 = vadd.f32 0.0, %v1188
    %v1190 = vpop.f32.mrf.mxu0
    %1191 = vmatprep.mubr.f32.mxu0 0.0
    %1192 = vmatmul.mubr.f32.gmra.mxu0 %v1034
    %v1193 = vpop.f32.mrf.mxu0
    %v1194 = vadd.f32 0.0, %v1193
    %v1195 = vpop.f32.mrf.mxu0
    %1196 = vmatprep.mubr.f32.mxu0 0.0
    %1197 = vmatmul.mubr.f32.gmra.mxu0 %v1035
    %v1198 = vpop.f32.mrf.mxu0
    %v1199 = vadd.f32 0.0, %v1198
    %v1200 = vpop.f32.mrf.mxu0
    %1201 = vmatprep.mubr.f32.mxu0 0.0
    %1202 = vmatmul.mubr.f32.gmra.mxu0 %v1036
    %v1203 = vpop.f32.mrf.mxu0
    %v1204 = vadd.f32 0.0, %v1203
    %v1205 = vpop.f32.mrf.mxu0
    %1206 = vmatprep.mubr.f32.mxu0 0.0
    %1207 = vmatmul.mubr.f32.gmra.mxu0 %v1037
    %v1208 = vpop.f32.mrf.mxu0
    %v1209 = vadd.f32 0.0, %v1208
    %v1210 = vpop.f32.mrf.mxu0
    %1211 = vmatprep.mubr.f32.mxu0 0.0
    %1212 = vmatmul.mubr.f32.gmra.mxu0 %v1038
    %v1213 = vpop.f32.mrf.mxu0
    %v1214 = vadd.f32 0.0, %v1213
    %v1215 = vpop.f32.mrf.mxu0
    %1216 = vdwg.mxu0
    %1217 = vmatprep.subr.mxu0 0.0
    %1218 = vmatpush1.msra.mxu0 %v1070
    %1219 = vmatprep.subr.mxu0 0.0
    %1220 = vmatpush1.msra.mxu0 %v1069
    %1221 = vmatprep.subr.mxu0 0.0
    %1222 = vmatpush1.msra.mxu0 %v1068
    %1223 = vmatprep.subr.mxu0 0.0
    %1224 = vmatpush1.msra.mxu0 %v1067
    %1225 = vmatprep.subr.mxu0 0.0
    %1226 = vmatpush1.msra.mxu0 %v1066
    %1227 = vmatprep.subr.mxu0 0.0
    %1228 = vmatpush1.msra.mxu0 %v1065
    %1229 = vmatprep.subr.mxu0 0.0
    %1230 = vmatpush1.msra.mxu0 %v1064
    %1231 = vmatprep.subr.mxu0 0.0
    %1232 = vmatpush1.msra.mxu0 %v1063
    %1233 = vmatprep.subr.mxu0 0.0
    %1234 = vmatpush1.msra.mxu0 %v1062
    %1235 = vmatprep.subr.mxu0 0.0
    %1236 = vmatpush1.msra.mxu0 %v1061
    %1237 = vmatprep.subr.mxu0 0.0
    %1238 = vmatpush1.msra.mxu0 %v1060
    %1239 = vmatprep.subr.mxu0 0.0
    %1240 = vmatpush1.msra.mxu0 %v1059
    %1241 = vmatprep.subr.mxu0 0.0
    %1242 = vmatpush1.msra.mxu0 %v1058
    %1243 = vmatprep.subr.mxu0 0.0
    %1244 = vmatpush1.msra.mxu0 %v1057
    %1245 = vmatprep.subr.mxu0 0.0
    %1246 = vmatpush1.msra.mxu0 %v1056
    %1247 = vmatprep.subr.mxu0 0.0
    %1248 = vmatpush1.msra.mxu0 %v1055
    %1249 = vmatprep.subr.mxu0 0.0
    %1250 = vmatpush2.msra.mxu0 0.0
    %1251 = vmatprep.subr.mxu0 0.0
    %1252 = vmatpush2.msra.mxu0 0.0
    %1253 = vmatprep.subr.mxu0 0.0
    %1254 = vmatpush2.msra.mxu0 0.0
    %1255 = vmatprep.subr.mxu0 0.0
    %1256 = vmatpush2.msra.mxu0 0.0
    %1257 = vmatprep.subr.mxu0 0.0
    %1258 = vmatpush2.msra.mxu0 0.0
    %1259 = vmatprep.subr.mxu0 0.0
    %1260 = vmatpush2.msra.mxu0 0.0
    %1261 = vmatprep.subr.mxu0 0.0
    %1262 = vmatpush2.msra.mxu0 0.0
    %1263 = vmatprep.subr.mxu0 0.0
    %1264 = vmatpush2.msra.mxu0 0.0
    %1265 = vmatprep.subr.mxu0 0.0
    %1266 = vmatpush2.msra.mxu0 0.0
    %1267 = vmatprep.subr.mxu0 0.0
    %1268 = vmatpush2.msra.mxu0 0.0
    %1269 = vmatprep.subr.mxu0 0.0
    %1270 = vmatpush2.msra.mxu0 0.0
    %1271 = vmatprep.subr.mxu0 0.0
    %1272 = vmatpush2.msra.mxu0 0.0
    %1273 = vmatprep.subr.mxu0 0.0
    %1274 = vmatpush2.msra.mxu0 0.0
    %1275 = vmatprep.subr.mxu0 0.0
    %1276 = vmatpush2.msra.mxu0 0.0
    %1277 = vmatprep.subr.mxu0 0.0
    %1278 = vmatpush2.msra.mxu0 0.0
    %1279 = vmatprep.subr.mxu0 0.0
    %1280 = vmatpush2.msra.mxu0 0.0
    %1281 = vmatprep.mubr.f32.mxu0 0.0
    %1282 = vmatmul.mubr.f32.gmra.mxu0 %v1023
    %v1283 = vpop.f32.mrf.mxu0
    %v1284 = vadd.f32 0.0, %v1283
    %v1285 = vpop.f32.mrf.mxu0
    %1286 = vmatprep.mubr.f32.mxu0 0.0
    %1287 = vmatmul.mubr.f32.gmra.mxu0 %v1024
    %v1288 = vpop.f32.mrf.mxu0
    %v1289 = vadd.f32 0.0, %v1288
    %v1290 = vpop.f32.mrf.mxu0
    %1291 = vmatprep.mubr.f32.mxu0 0.0
    %1292 = vmatmul.mubr.f32.gmra.mxu0 %v1025
    %v1293 = vpop.f32.mrf.mxu0
    %v1294 = vadd.f32 0.0, %v1293
    %v1295 = vpop.f32.mrf.mxu0
    %1296 = vmatprep.mubr.f32.mxu0 0.0
    %1297 = vmatmul.mubr.f32.gmra.mxu0 %v1026
    %v1298 = vpop.f32.mrf.mxu0
    %v1299 = vadd.f32 0.0, %v1298
    %v1300 = vpop.f32.mrf.mxu0
    %1301 = vmatprep.mubr.f32.mxu0 0.0
    %1302 = vmatmul.mubr.f32.gmra.mxu0 %v1027
    %v1303 = vpop.f32.mrf.mxu0
    %v1304 = vadd.f32 0.0, %v1303
    %v1305 = vpop.f32.mrf.mxu0
    %1306 = vmatprep.mubr.f32.mxu0 0.0
    %1307 = vmatmul.mubr.f32.gmra.mxu0 %v1028
    %v1308 = vpop.f32.mrf.mxu0
    %v1309 = vadd.f32 0.0, %v1308
    %v1310 = vpop.f32.mrf.mxu0
    %1311 = vmatprep.mubr.f32.mxu0 0.0
    %1312 = vmatmul.mubr.f32.gmra.mxu0 %v1029
    %v1313 = vpop.f32.mrf.mxu0
    %v1314 = vadd.f32 0.0, %v1313
    %v1315 = vpop.f32.mrf.mxu0
    %1316 = vmatprep.mubr.f32.mxu0 0.0
    %1317 = vmatmul.mubr.f32.gmra.mxu0 %v1030
    %v1318 = vpop.f32.mrf.mxu0
    %v1319 = vadd.f32 0.0, %v1318
    %v1320 = vpop.f32.mrf.mxu0
    %1321 = vmatprep.mubr.f32.mxu0 0.0
    %1322 = vmatmul.mubr.f32.gmra.mxu0 %v1031
    %v1323 = vpop.f32.mrf.mxu0
    %v1324 = vadd.f32 0.0, %v1323
    %v1325 = vpop.f32.mrf.mxu0
    %1326 = vmatprep.mubr.f32.mxu0 0.0
    %1327 = vmatmul.mubr.f32.gmra.mxu0 %v1032
    %v1328 = vpop.f32.mrf.mxu0
    %v1329 = vadd.f32 0.0, %v1328
    %v1330 = vpop.f32.mrf.mxu0
    %1331 = vmatprep.mubr.f32.mxu0 0.0
    %1332 = vmatmul.mubr.f32.gmra.mxu0 %v1033
    %v1333 = vpop.f32.mrf.mxu0
    %v1334 = vadd.f32 0.0, %v1333
    %v1335 = vpop.f32.mrf.mxu0
    %1336 = vmatprep.mubr.f32.mxu0 0.0
    %1337 = vmatmul.mubr.f32.gmra.mxu0 %v1034
    %v1338 = vpop.f32.mrf.mxu0
    %v1339 = vadd.f32 0.0, %v1338
    %v1340 = vpop.f32.mrf.mxu0
    %1341 = vmatprep.mubr.f32.mxu0 0.0
    %1342 = vmatmul.mubr.f32.gmra.mxu0 %v1035
    %v1343 = vpop.f32.mrf.mxu0
    %v1344 = vadd.f32 0.0, %v1343
    %v1345 = vpop.f32.mrf.mxu0
    %1346 = vmatprep.mubr.f32.mxu0 0.0
    %1347 = vmatmul.mubr.f32.gmra.mxu0 %v1036
    %v1348 = vpop.f32.mrf.mxu0
    %v1349 = vadd.f32 0.0, %v1348
    %v1350 = vpop.f32.mrf.mxu0
    %1351 = vmatprep.mubr.f32.mxu0 0.0
    %1352 = vmatmul.mubr.f32.gmra.mxu0 %v1037
    %v1353 = vpop.f32.mrf.mxu0
    %v1354 = vadd.f32 0.0, %v1353
    %v1355 = vpop.f32.mrf.mxu0
    %1356 = vmatprep.mubr.f32.mxu0 0.0
    %1357 = vmatmul.mubr.f32.gmra.mxu0 %v1038
    %v1358 = vpop.f32.mrf.mxu0
    %v1359 = vadd.f32 0.0, %v1358
    %v1360 = vpop.f32.mrf.mxu0
    %1361 = vdwg.mxu0
    %1362 = vmatprep.subr.mxu0 0.0
    %1363 = vmatpush1.xpose.msra.mxu0 %v1359
    %1364 = vmatprep.subr.mxu0 0.0
    %1365 = vmatpush1.xpose.msra.mxu0 %v1354
    %1366 = vmatprep.subr.mxu0 0.0
    %1367 = vmatpush1.xpose.msra.mxu0 %v1349
    %1368 = vmatprep.subr.mxu0 0.0
    %1369 = vmatpush1.xpose.msra.mxu0 %v1344
    %1370 = vmatprep.subr.mxu0 0.0
    %1371 = vmatpush1.xpose.msra.mxu0 %v1339
    %1372 = vmatprep.subr.mxu0 0.0
    %1373 = vmatpush1.xpose.msra.mxu0 %v1334
    %1374 = vmatprep.subr.mxu0 0.0
    %1375 = vmatpush1.xpose.msra.mxu0 %v1329
    %1376 = vmatprep.subr.mxu0 0.0
    %1377 = vmatpush1.xpose.msra.mxu0 %v1324
    %1378 = vmatprep.subr.mxu0 0.0
    %1379 = vmatpush1.xpose.msra.mxu0 %v1319
    %1380 = vmatprep.subr.mxu0 0.0
    %1381 = vmatpush1.xpose.msra.mxu0 %v1314
    %1382 = vmatprep.subr.mxu0 0.0
    %1383 = vmatpush1.xpose.msra.mxu0 %v1309
    %1384 = vmatprep.subr.mxu0 0.0
    %1385 = vmatpush1.xpose.msra.mxu0 %v1304
    %1386 = vmatprep.subr.mxu0 0.0
    %1387 = vmatpush1.xpose.msra.mxu0 %v1299
    %1388 = vmatprep.subr.mxu0 0.0
    %1389 = vmatpush1.xpose.msra.mxu0 %v1294
    %1390 = vmatprep.subr.mxu0 0.0
    %1391 = vmatpush1.xpose.msra.mxu0 %v1289
    %1392 = vmatprep.subr.mxu0 0.0
    %1393 = vmatpush1.xpose.msra.mxu0 %v1284
    %1394 = vmatprep.subr.mxu0 0.0
    %1395 = vmatpush2.xpose.msra.mxu0 0.0
    %1396 = vmatprep.subr.mxu0 0.0
    %1397 = vmatpush2.xpose.msra.mxu0 0.0
    %1398 = vmatprep.subr.mxu0 0.0
    %1399 = vmatpush2.xpose.msra.mxu0 0.0
    %1400 = vmatprep.subr.mxu0 0.0
    %1401 = vmatpush2.xpose.msra.mxu0 0.0
    %1402 = vmatprep.subr.mxu0 0.0
    %1403 = vmatpush2.xpose.msra.mxu0 0.0
    %1404 = vmatprep.subr.mxu0 0.0
    %1405 = vmatpush2.xpose.msra.mxu0 0.0
    %1406 = vmatprep.subr.mxu0 0.0
    %1407 = vmatpush2.xpose.msra.mxu0 0.0
    %1408 = vmatprep.subr.mxu0 0.0
    %1409 = vmatpush2.xpose.msra.mxu0 0.0
    %1410 = vmatprep.subr.mxu0 0.0
    %1411 = vmatpush2.xpose.msra.mxu0 0.0
    %1412 = vmatprep.subr.mxu0 0.0
    %1413 = vmatpush2.xpose.msra.mxu0 0.0
    %1414 = vmatprep.subr.mxu0 0.0
    %1415 = vmatpush2.xpose.msra.mxu0 0.0
    %1416 = vmatprep.subr.mxu0 0.0
    %1417 = vmatpush2.xpose.msra.mxu0 0.0
    %1418 = vmatprep.subr.mxu0 0.0
    %1419 = vmatpush2.xpose.msra.mxu0 0.0
    %1420 = vmatprep.subr.mxu0 0.0
    %1421 = vmatpush2.xpose.msra.mxu0 0.0
    %1422 = vmatprep.subr.mxu0 0.0
    %1423 = vmatpush2.xpose.msra.mxu0 0.0
    %1424 = vmatprep.subr.mxu0 0.0
    %1425 = vmatpush2.xpose.msra.mxu0 0.0
    %1426 = vmatprep.mubr.f32.mxu0 0.0
    %1427 = vmatmul.mubr.f32.gmra.mxu0 %v1139
    %v1428 = vpop.f32.mrf.mxu0
    %v1429 = vadd.f32 0.0, %v1428
    %v1430 = vpop.f32.mrf.mxu0
    %1431 = vmatprep.mubr.f32.mxu0 0.0
    %1432 = vmatmul.mubr.f32.gmra.mxu0 %v1144
    %v1433 = vpop.f32.mrf.mxu0
    %v1434 = vadd.f32 0.0, %v1433
    %v1435 = vpop.f32.mrf.mxu0
    %1436 = vmatprep.mubr.f32.mxu0 0.0
    %1437 = vmatmul.mubr.f32.gmra.mxu0 %v1149
    %v1438 = vpop.f32.mrf.mxu0
    %v1439 = vadd.f32 0.0, %v1438
    %v1440 = vpop.f32.mrf.mxu0
    %1441 = vmatprep.mubr.f32.mxu0 0.0
    %1442 = vmatmul.mubr.f32.gmra.mxu0 %v1154
    %v1443 = vpop.f32.mrf.mxu0
    %v1444 = vadd.f32 0.0, %v1443
    %v1445 = vpop.f32.mrf.mxu0
    %1446 = vmatprep.mubr.f32.mxu0 0.0
    %1447 = vmatmul.mubr.f32.gmra.mxu0 %v1159
    %v1448 = vpop.f32.mrf.mxu0
    %v1449 = vadd.f32 0.0, %v1448
    %v1450 = vpop.f32.mrf.mxu0
    %1451 = vmatprep.mubr.f32.mxu0 0.0
    %1452 = vmatmul.mubr.f32.gmra.mxu0 %v1164
    %v1453 = vpop.f32.mrf.mxu0
    %v1454 = vadd.f32 0.0, %v1453
    %v1455 = vpop.f32.mrf.mxu0
    %1456 = vmatprep.mubr.f32.mxu0 0.0
    %1457 = vmatmul.mubr.f32.gmra.mxu0 %v1169
    %v1458 = vpop.f32.mrf.mxu0
    %v1459 = vadd.f32 0.0, %v1458
    %v1460 = vpop.f32.mrf.mxu0
    %1461 = vmatprep.mubr.f32.mxu0 0.0
    %1462 = vmatmul.mubr.f32.gmra.mxu0 %v1174
    %v1463 = vpop.f32.mrf.mxu0
    %v1464 = vadd.f32 0.0, %v1463
    %v1465 = vpop.f32.mrf.mxu0
    %1466 = vmatprep.mubr.f32.mxu0 0.0
    %1467 = vmatmul.mubr.f32.gmra.mxu0 %v1179
    %v1468 = vpop.f32.mrf.mxu0
    %v1469 = vadd.f32 0.0, %v1468
    %v1470 = vpop.f32.mrf.mxu0
    %1471 = vmatprep.mubr.f32.mxu0 0.0
    %1472 = vmatmul.mubr.f32.gmra.mxu0 %v1184
    %v1473 = vpop.f32.mrf.mxu0
    %v1474 = vadd.f32 0.0, %v1473
    %v1475 = vpop.f32.mrf.mxu0
    %1476 = vmatprep.mubr.f32.mxu0 0.0
    %1477 = vmatmul.mubr.f32.gmra.mxu0 %v1189
    %v1478 = vpop.f32.mrf.mxu0
    %v1479 = vadd.f32 0.0, %v1478
    %v1480 = vpop.f32.mrf.mxu0
    %1481 = vmatprep.mubr.f32.mxu0 0.0
    %1482 = vmatmul.mubr.f32.gmra.mxu0 %v1194
    %v1483 = vpop.f32.mrf.mxu0
    %v1484 = vadd.f32 0.0, %v1483
    %v1485 = vpop.f32.mrf.mxu0
    %1486 = vmatprep.mubr.f32.mxu0 0.0
    %1487 = vmatmul.mubr.f32.gmra.mxu0 %v1199
    %v1488 = vpop.f32.mrf.mxu0
    %v1489 = vadd.f32 0.0, %v1488
    %v1490 = vpop.f32.mrf.mxu0
    %1491 = vmatprep.mubr.f32.mxu0 0.0
    %1492 = vmatmul.mubr.f32.gmra.mxu0 %v1204
    %v1493 = vpop.f32.mrf.mxu0
    %v1494 = vadd.f32 0.0, %v1493
    %v1495 = vpop.f32.mrf.mxu0
    %1496 = vmatprep.mubr.f32.mxu0 0.0
    %1497 = vmatmul.mubr.f32.gmra.mxu0 %v1209
    %v1498 = vpop.f32.mrf.mxu0
    %v1499 = vadd.f32 0.0, %v1498
    %v1500 = vpop.f32.mrf.mxu0
    %1501 = vmatprep.mubr.f32.mxu0 0.0
    %1502 = vmatmul.mubr.f32.gmra.mxu0 %v1214
    %v1503 = vpop.f32.mrf.mxu0
    %v1504 = vadd.f32 0.0, %v1503
    %v1505 = vpop.f32.mrf.mxu0
    %1506 = vdwg.mxu0
    %vm1507 = vcmp.gt.f32.partialorder %v1429, 0.0
    %vm1508 = vcmp.gt.f32.partialorder %v1434, 0.0
    %vm1509 = vcmp.gt.f32.partialorder %v1439, 0.0
    %vm1510 = vcmp.gt.f32.partialorder %v1444, 0.0
    %vm1511 = vcmp.gt.f32.partialorder %v1449, 0.0
    %vm1512 = vcmp.gt.f32.partialorder %v1454, 0.0
    %vm1513 = vcmp.gt.f32.partialorder %v1459, 0.0
    %vm1514 = vcmp.gt.f32.partialorder %v1464, 0.0
    %vm1515 = vcmp.gt.f32.partialorder %v1469, 0.0
    %vm1516 = vcmp.gt.f32.partialorder %v1474, 0.0
    %vm1517 = vcmp.gt.f32.partialorder %v1479, 0.0
    %vm1518 = vcmp.gt.f32.partialorder %v1484, 0.0
    %vm1519 = vcmp.gt.f32.partialorder %v1489, 0.0
    %vm1520 = vcmp.gt.f32.partialorder %v1494, 0.0
    %vm1521 = vcmp.gt.f32.partialorder %v1499, 0.0
    %vm1522 = vcmp.gt.f32.partialorder %v1504, 0.0
    %v1523 = vmul.f32 %v1429, 0.2
    %v1524 = vmul.f32 %v1434, 0.2
    %v1525 = vmul.f32 %v1439, 0.2
    %v1526 = vmul.f32 %v1444, 0.2
    %v1527 = vmul.f32 %v1449, 0.2
    %v1528 = vmul.f32 %v1454, 0.2
    %v1529 = vmul.f32 %v1459, 0.2
    %v1530 = vmul.f32 %v1464, 0.2
    %v1531 = vmul.f32 %v1469, 0.2
    %v1532 = vmul.f32 %v1474, 0.2
    %v1533 = vmul.f32 %v1479, 0.2
    %v1534 = vmul.f32 %v1484, 0.2
    %v1535 = vmul.f32 %v1489, 0.2
    %v1536 = vmul.f32 %v1494, 0.2
    %v1537 = vmul.f32 %v1499, 0.2
    %v1538 = vmul.f32 %v1504, 0.2
    %v1539 = vsel %vm1507, %v1429, %v1523
    %v1540 = vsel %vm1508, %v1434, %v1524
    %v1541 = vsel %vm1509, %v1439, %v1525
    %v1542 = vsel %vm1510, %v1444, %v1526
    %v1543 = vsel %vm1511, %v1449, %v1527
    %v1544 = vsel %vm1512, %v1454, %v1528
    %v1545 = vsel %vm1513, %v1459, %v1529
    %v1546 = vsel %vm1514, %v1464, %v1530
    %v1547 = vsel %vm1515, %v1469, %v1531
    %v1548 = vsel %vm1516, %v1474, %v1532
    %v1549 = vsel %vm1517, %v1479, %v1533
    %v1550 = vsel %vm1518, %v1484, %v1534
    %v1551 = vsel %vm1519, %v1489, %v1535
    %v1552 = vsel %vm1520, %v1494, %v1536
    %v1553 = vsel %vm1521, %v1499, %v1537
    %v1554 = vsel %vm1522, %v1504, %v1538
    %v1555 = vadd.f32 %v1539, %v148
    %v1556 = vadd.f32 %v1540, %v149
    %v1557 = vadd.f32 %v1541, %v150
    %v1558 = vadd.f32 %v1542, %v151
    %v1559 = vadd.f32 %v1543, %v152
    %v1560 = vadd.f32 %v1544, %v153
    %v1561 = vadd.f32 %v1545, %v154
    %v1562 = vadd.f32 %v1546, %v155
    %v1563 = vadd.f32 %v1547, %v156
    %v1564 = vadd.f32 %v1548, %v157
    %v1565 = vadd.f32 %v1549, %v158
    %v1566 = vadd.f32 %v1550, %v159
    %v1567 = vadd.f32 %v1551, %v160
    %v1568 = vadd.f32 %v1552, %v161
    %v1569 = vadd.f32 %v1553, %v162
    %v1570 = vadd.f32 %v1554, %v163
    %1571 = vmax.xlane.f32.xlu0 %v1555
    %v1572 = vpop.xlane.xlu0 %1571
    %1573 = vmax.xlane.f32.xlu0 %v1556
    %v1574 = vpop.xlane.xlu0 %1573
    %1575 = vmax.xlane.f32.xlu0 %v1557
    %v1576 = vpop.xlane.xlu0 %1575
    %1577 = vmax.xlane.f32.xlu0 %v1558
    %v1578 = vpop.xlane.xlu0 %1577
    %1579 = vmax.xlane.f32.xlu0 %v1559
    %v1580 = vpop.xlane.xlu0 %1579
    %1581 = vmax.xlane.f32.xlu0 %v1560
    %v1582 = vpop.xlane.xlu0 %1581
    %1583 = vmax.xlane.f32.xlu0 %v1561
    %v1584 = vpop.xlane.xlu0 %1583
    %1585 = vmax.xlane.f32.xlu0 %v1562
    %v1586 = vpop.xlane.xlu0 %1585
    %1587 = vmax.xlane.f32.xlu0 %v1563
    %v1588 = vpop.xlane.xlu0 %1587
    %1589 = vmax.xlane.f32.xlu0 %v1564
    %v1590 = vpop.xlane.xlu0 %1589
    %1591 = vmax.xlane.f32.xlu0 %v1565
    %v1592 = vpop.xlane.xlu0 %1591
    %1593 = vmax.xlane.f32.xlu0 %v1566
    %v1594 = vpop.xlane.xlu0 %1593
    %1595 = vmax.xlane.f32.xlu0 %v1567
    %v1596 = vpop.xlane.xlu0 %1595
    %1597 = vmax.xlane.f32.xlu0 %v1568
    %v1598 = vpop.xlane.xlu0 %1597
    %1599 = vmax.xlane.f32.xlu0 %v1569
    %v1600 = vpop.xlane.xlu0 %1599
    %1601 = vmax.xlane.f32.xlu0 %v1570
    %v1602 = vpop.xlane.xlu0 %1601
    %v1603 = vsub.f32 %v1555, %v1572
    %v1604 = vsub.f32 %v1556, %v1574
    %v1605 = vsub.f32 %v1557, %v1576
    %v1606 = vsub.f32 %v1558, %v1578
    %v1607 = vsub.f32 %v1559, %v1580
    %v1608 = vsub.f32 %v1560, %v1582
    %v1609 = vsub.f32 %v1561, %v1584
    %v1610 = vsub.f32 %v1562, %v1586
    %v1611 = vsub.f32 %v1563, %v1588
    %v1612 = vsub.f32 %v1564, %v1590
    %v1613 = vsub.f32 %v1565, %v1592
    %v1614 = vsub.f32 %v1566, %v1594
    %v1615 = vsub.f32 %v1567, %v1596
    %v1616 = vsub.f32 %v1568, %v1598
    %v1617 = vsub.f32 %v1569, %v1600
    %v1618 = vsub.f32 %v1570, %v1602
    %v1619 = vmul.f32 %v1603, 1.442695
    %v1620 = vpow.pop %v1619
    %v1621 = vmul.f32 %v1604, 1.442695
    %v1622 = vpow.pop %v1621
    %v1623 = vmul.f32 %v1605, 1.442695
    %v1624 = vpow.pop %v1623
    %v1625 = vmul.f32 %v1606, 1.442695
    %v1626 = vpow.pop %v1625
    %v1627 = vmul.f32 %v1607, 1.442695
    %v1628 = vpow.pop %v1627
    %v1629 = vmul.f32 %v1608, 1.442695
    %v1630 = vpow.pop %v1629
    %v1631 = vmul.f32 %v1609, 1.442695
    %v1632 = vpow.pop %v1631
    %v1633 = vmul.f32 %v1610, 1.442695
    %v1634 = vpow.pop %v1633
    %v1635 = vmul.f32 %v1611, 1.442695
    %v1636 = vpow.pop %v1635
    %v1637 = vmul.f32 %v1612, 1.442695
    %v1638 = vpow.pop %v1637
    %v1639 = vmul.f32 %v1613, 1.442695
    %v1640 = vpow.pop %v1639
    %v1641 = vmul.f32 %v1614, 1.442695
    %v1642 = vpow.pop %v1641
    %v1643 = vmul.f32 %v1615, 1.442695
    %v1644 = vpow.pop %v1643
    %v1645 = vmul.f32 %v1616, 1.442695
    %v1646 = vpow.pop %v1645
    %v1647 = vmul.f32 %v1617, 1.442695
    %v1648 = vpow.pop %v1647
    %v1649 = vmul.f32 %v1618, 1.442695
    %v1650 = vpow.pop %v1649
    %1651 = vadd.xlane.f32.xlu0 %v1620
    %v1652 = vpop.xlane.xlu0 %1651
    %1653 = vadd.xlane.f32.xlu0 %v1622
    %v1654 = vpop.xlane.xlu0 %1653
    %1655 = vadd.xlane.f32.xlu0 %v1624
    %v1656 = vpop.xlane.xlu0 %1655
    %1657 = vadd.xlane.f32.xlu0 %v1626
    %v1658 = vpop.xlane.xlu0 %1657
    %1659 = vadd.xlane.f32.xlu0 %v1628
    %v1660 = vpop.xlane.xlu0 %1659
    %1661 = vadd.xlane.f32.xlu0 %v1630
    %v1662 = vpop.xlane.xlu0 %1661
    %1663 = vadd.xlane.f32.xlu0 %v1632
    %v1664 = vpop.xlane.xlu0 %1663
    %1665 = vadd.xlane.f32.xlu0 %v1634
    %v1666 = vpop.xlane.xlu0 %1665
    %1667 = vadd.xlane.f32.xlu0 %v1636
    %v1668 = vpop.xlane.xlu0 %1667
    %1669 = vadd.xlane.f32.xlu0 %v1638
    %v1670 = vpop.xlane.xlu0 %1669
    %1671 = vadd.xlane.f32.xlu0 %v1640
    %v1672 = vpop.xlane.xlu0 %1671
    %1673 = vadd.xlane.f32.xlu0 %v1642
    %v1674 = vpop.xlane.xlu0 %1673
    %1675 = vadd.xlane.f32.xlu0 %v1644
    %v1676 = vpop.xlane.xlu0 %1675
    %1677 = vadd.xlane.f32.xlu0 %v1646
    %v1678 = vpop.xlane.xlu0 %1677
    %1679 = vadd.xlane.f32.xlu0 %v1648
    %v1680 = vpop.xlane.xlu0 %1679
    %1681 = vadd.xlane.f32.xlu0 %v1650
    %v1682 = vpop.xlane.xlu0 %1681
    %1683 = vmatprep.subr.mxu0 0.0
    %1684 = vmatpush1.msra.mxu0 %v1214
    %1685 = vmatprep.subr.mxu0 0.0
    %1686 = vmatpush1.msra.mxu0 %v1209
    %1687 = vmatprep.subr.mxu0 0.0
    %1688 = vmatpush1.msra.mxu0 %v1204
    %1689 = vmatprep.subr.mxu0 0.0
    %1690 = vmatpush1.msra.mxu0 %v1199
    %1691 = vmatprep.subr.mxu0 0.0
    %1692 = vmatpush1.msra.mxu0 %v1194
    %1693 = vmatprep.subr.mxu0 0.0
    %1694 = vmatpush1.msra.mxu0 %v1189
    %1695 = vmatprep.subr.mxu0 0.0
    %1696 = vmatpush1.msra.mxu0 %v1184
    %1697 = vmatprep.subr.mxu0 0.0
    %1698 = vmatpush1.msra.mxu0 %v1179
    %1699 = vmatprep.subr.mxu0 0.0
    %1700 = vmatpush1.msra.mxu0 %v1174
    %1701 = vmatprep.subr.mxu0 0.0
    %1702 = vmatpush1.msra.mxu0 %v1169
    %1703 = vmatprep.subr.mxu0 0.0
    %1704 = vmatpush1.msra.mxu0 %v1164
    %1705 = vmatprep.subr.mxu0 0.0
    %1706 = vmatpush1.msra.mxu0 %v1159
    %1707 = vmatprep.subr.mxu0 0.0
    %1708 = vmatpush1.msra.mxu0 %v1154
    %1709 = vmatprep.subr.mxu0 0.0
    %1710 = vmatpush1.msra.mxu0 %v1149
    %1711 = vmatprep.subr.mxu0 0.0
    %1712 = vmatpush1.msra.mxu0 %v1144
    %1713 = vmatprep.subr.mxu0 0.0
    %1714 = vmatpush1.msra.mxu0 %v1139
    %1715 = vmatprep.subr.mxu0 0.0
    %1716 = vmatpush2.msra.mxu0 0.0
    %1717 = vmatprep.subr.mxu0 0.0
    %1718 = vmatpush2.msra.mxu0 0.0
    %1719 = vmatprep.subr.mxu0 0.0
    %1720 = vmatpush2.msra.mxu0 0.0
    %1721 = vmatprep.subr.mxu0 0.0
    %1722 = vmatpush2.msra.mxu0 0.0
    %1723 = vmatprep.subr.mxu0 0.0
    %1724 = vmatpush2.msra.mxu0 0.0
    %1725 = vmatprep.subr.mxu0 0.0
    %1726 = vmatpush2.msra.mxu0 0.0
    %1727 = vmatprep.subr.mxu0 0.0
    %1728 = vmatpush2.msra.mxu0 0.0
    %1729 = vmatprep.subr.mxu0 0.0
    %1730 = vmatpush2.msra.mxu0 0.0
    %1731 = vmatprep.subr.mxu0 0.0
    %1732 = vmatpush2.msra.mxu0 0.0
    %1733 = vmatprep.subr.mxu0 0.0
    %1734 = vmatpush2.msra.mxu0 0.0
    %1735 = vmatprep.subr.mxu0 0.0
    %1736 = vmatpush2.msra.mxu0 0.0
    %1737 = vmatprep.subr.mxu0 0.0
    %1738 = vmatpush2.msra.mxu0 0.0
    %1739 = vmatprep.subr.mxu0 0.0
    %1740 = vmatpush2.msra.mxu0 0.0
    %1741 = vmatprep.subr.mxu0 0.0
    %1742 = vmatpush2.msra.mxu0 0.0
    %1743 = vmatprep.subr.mxu0 0.0
    %1744 = vmatpush2.msra.mxu0 0.0
    %1745 = vmatprep.subr.mxu0 0.0
    %1746 = vmatpush2.msra.mxu0 0.0
    %1747 = vmatprep.mubr.f32.mxu0 0.0
    %1748 = vmatmul.mubr.f32.gmra.mxu0 %v1620
    %v1749 = vpop.f32.mrf.mxu0
    %v1750 = vadd.f32 0.0, %v1749
    %v1751 = vpop.f32.mrf.mxu0
    %1752 = vmatprep.mubr.f32.mxu0 0.0
    %1753 = vmatmul.mubr.f32.gmra.mxu0 %v1622
    %v1754 = vpop.f32.mrf.mxu0
    %v1755 = vadd.f32 0.0, %v1754
    %v1756 = vpop.f32.mrf.mxu0
    %1757 = vmatprep.mubr.f32.mxu0 0.0
    %1758 = vmatmul.mubr.f32.gmra.mxu0 %v1624
    %v1759 = vpop.f32.mrf.mxu0
    %v1760 = vadd.f32 0.0, %v1759
    %v1761 = vpop.f32.mrf.mxu0
    %1762 = vmatprep.mubr.f32.mxu0 0.0
    %1763 = vmatmul.mubr.f32.gmra.mxu0 %v1626
    %v1764 = vpop.f32.mrf.mxu0
    %v1765 = vadd.f32 0.0, %v1764
    %v1766 = vpop.f32.mrf.mxu0
    %1767 = vmatprep.mubr.f32.mxu0 0.0
    %1768 = vmatmul.mubr.f32.gmra.mxu0 %v1628
    %v1769 = vpop.f32.mrf.mxu0
    %v1770 = vadd.f32 0.0, %v1769
    %v1771 = vpop.f32.mrf.mxu0
    %1772 = vmatprep.mubr.f32.mxu0 0.0
    %1773 = vmatmul.mubr.f32.gmra.mxu0 %v1630
    %v1774 = vpop.f32.mrf.mxu0
    %v1775 = vadd.f32 0.0, %v1774
    %v1776 = vpop.f32.mrf.mxu0
    %1777 = vmatprep.mubr.f32.mxu0 0.0
    %1778 = vmatmul.mubr.f32.gmra.mxu0 %v1632
    %v1779 = vpop.f32.mrf.mxu0
    %v1780 = vadd.f32 0.0, %v1779
    %v1781 = vpop.f32.mrf.mxu0
    %1782 = vmatprep.mubr.f32.mxu0 0.0
    %1783 = vmatmul.mubr.f32.gmra.mxu0 %v1634
    %v1784 = vpop.f32.mrf.mxu0
    %v1785 = vadd.f32 0.0, %v1784
    %v1786 = vpop.f32.mrf.mxu0
    %1787 = vmatprep.mubr.f32.mxu0 0.0
    %1788 = vmatmul.mubr.f32.gmra.mxu0 %v1636
    %v1789 = vpop.f32.mrf.mxu0
    %v1790 = vadd.f32 0.0, %v1789
    %v1791 = vpop.f32.mrf.mxu0
    %1792 = vmatprep.mubr.f32.mxu0 0.0
    %1793 = vmatmul.mubr.f32.gmra.mxu0 %v1638
    %v1794 = vpop.f32.mrf.mxu0
    %v1795 = vadd.f32 0.0, %v1794
    %v1796 = vpop.f32.mrf.mxu0
    %1797 = vmatprep.mubr.f32.mxu0 0.0
    %1798 = vmatmul.mubr.f32.gmra.mxu0 %v1640
    %v1799 = vpop.f32.mrf.mxu0
    %v1800 = vadd.f32 0.0, %v1799
    %v1801 = vpop.f32.mrf.mxu0
    %1802 = vmatprep.mubr.f32.mxu0 0.0
    %1803 = vmatmul.mubr.f32.gmra.mxu0 %v1642
    %v1804 = vpop.f32.mrf.mxu0
    %v1805 = vadd.f32 0.0, %v1804
    %v1806 = vpop.f32.mrf.mxu0
    %1807 = vmatprep.mubr.f32.mxu0 0.0
    %1808 = vmatmul.mubr.f32.gmra.mxu0 %v1644
    %v1809 = vpop.f32.mrf.mxu0
    %v1810 = vadd.f32 0.0, %v1809
    %v1811 = vpop.f32.mrf.mxu0
    %1812 = vmatprep.mubr.f32.mxu0 0.0
    %1813 = vmatmul.mubr.f32.gmra.mxu0 %v1646
    %v1814 = vpop.f32.mrf.mxu0
    %v1815 = vadd.f32 0.0, %v1814
    %v1816 = vpop.f32.mrf.mxu0
    %1817 = vmatprep.mubr.f32.mxu0 0.0
    %1818 = vmatmul.mubr.f32.gmra.mxu0 %v1648
    %v1819 = vpop.f32.mrf.mxu0
    %v1820 = vadd.f32 0.0, %v1819
    %v1821 = vpop.f32.mrf.mxu0
    %1822 = vmatprep.mubr.f32.mxu0 0.0
    %1823 = vmatmul.mubr.f32.gmra.mxu0 %v1650
    %v1824 = vpop.f32.mrf.mxu0
    %v1825 = vadd.f32 0.0, %v1824
    %v1826 = vpop.f32.mrf.mxu0
    %1827 = vdwg.mxu0
    %v1828 = vrcp.pop %v1652
    %v1829 = vmul.f32 %v1750, %v1828
    %v1830 = vrcp.pop %v1654
    %v1831 = vmul.f32 %v1755, %v1830
    %v1832 = vrcp.pop %v1656
    %v1833 = vmul.f32 %v1760, %v1832
    %v1834 = vrcp.pop %v1658
    %v1835 = vmul.f32 %v1765, %v1834
    %v1836 = vrcp.pop %v1660
    %v1837 = vmul.f32 %v1770, %v1836
    %v1838 = vrcp.pop %v1662
    %v1839 = vmul.f32 %v1775, %v1838
    %v1840 = vrcp.pop %v1664
    %v1841 = vmul.f32 %v1780, %v1840
    %v1842 = vrcp.pop %v1666
    %v1843 = vmul.f32 %v1785, %v1842
    %v1844 = vrcp.pop %v1668
    %v1845 = vmul.f32 %v1790, %v1844
    %v1846 = vrcp.pop %v1670
    %v1847 = vmul.f32 %v1795, %v1846
    %v1848 = vrcp.pop %v1672
    %v1849 = vmul.f32 %v1800, %v1848
    %v1850 = vrcp.pop %v1674
    %v1851 = vmul.f32 %v1805, %v1850
    %v1852 = vrcp.pop %v1676
    %v1853 = vmul.f32 %v1810, %v1852
    %v1854 = vrcp.pop %v1678
    %v1855 = vmul.f32 %v1815, %v1854
    %v1856 = vrcp.pop %v1680
    %v1857 = vmul.f32 %v1820, %v1856
    %v1858 = vrcp.pop %v1682
    %v1859 = vmul.f32 %v1825, %v1858
    %v1861 = vlaneseq
    %v1862 = vshrl.u32 %v1861, 7
    %v1863 = vsub.s32 0, %v1862
    %v1864 = vrot.slane %v1071, %v1863
    %v1866 = vadd.f32 %v1829, %v1864
    %v1867 = vadd.f32 %v1831, %v1864
    %v1868 = vadd.f32 %v1833, %v1864
    %v1869 = vadd.f32 %v1835, %v1864
    %v1870 = vadd.f32 %v1837, %v1864
    %v1871 = vadd.f32 %v1839, %v1864
    %v1872 = vadd.f32 %v1841, %v1864
    %v1873 = vadd.f32 %v1843, %v1864
    %v1874 = vadd.f32 %v1845, %v1864
    %v1875 = vadd.f32 %v1847, %v1864
    %v1876 = vadd.f32 %v1849, %v1864
    %v1877 = vadd.f32 %v1851, %v1864
    %v1878 = vadd.f32 %v1853, %v1864
    %v1879 = vadd.f32 %v1855, %v1864
    %v1880 = vadd.f32 %v1857, %v1864
    %v1881 = vadd.f32 %v1859, %v1864
    %v1882 = vmax.f32 %v1866, 0.0
    %v1883 = vmax.f32 %v1867, 0.0
    %v1884 = vmax.f32 %v1868, 0.0
    %v1885 = vmax.f32 %v1869, 0.0
    %v1886 = vmax.f32 %v1870, 0.0
    %v1887 = vmax.f32 %v1871, 0.0
    %v1888 = vmax.f32 %v1872, 0.0
    %v1889 = vmax.f32 %v1873, 0.0
    %v1890 = vmax.f32 %v1874, 0.0
    %v1891 = vmax.f32 %v1875, 0.0
    %v1892 = vmax.f32 %v1876, 0.0
    %v1893 = vmax.f32 %v1877, 0.0
    %v1894 = vmax.f32 %v1878, 0.0
    %v1895 = vmax.f32 %v1879, 0.0
    %v1896 = vmax.f32 %v1880, 0.0
    %v1897 = vmax.f32 %v1881, 0.0
    %v1898 = vld [vmem:[#allocation13] sm:$0xff]
    %v1899 = vld [vmem:[#allocation13 + $0x8] sm:$0xff]
    %v1900 = vld [vmem:[#allocation13 + $0x10] sm:$0xff]
    %v1901 = vld [vmem:[#allocation13 + $0x18] sm:$0xff]
    %v1902 = vld [vmem:[#allocation13 + $0x20] sm:$0xff]
    %v1903 = vld [vmem:[#allocation13 + $0x28] sm:$0xff]
    %v1904 = vld [vmem:[#allocation13 + $0x30] sm:$0xff]
    %v1905 = vld [vmem:[#allocation13 + $0x38] sm:$0xff]
    %v1906 = vld [vmem:[#allocation13 + $0x40] sm:$0xff]
    %v1907 = vld [vmem:[#allocation13 + $0x48] sm:$0xff]
    %v1908 = vld [vmem:[#allocation13 + $0x50] sm:$0xff]
    %v1909 = vld [vmem:[#allocation13 + $0x58] sm:$0xff]
    %v1910 = vld [vmem:[#allocation13 + $0x60] sm:$0xff]
    %v1911 = vld [vmem:[#allocation13 + $0x68] sm:$0xff]
    %v1912 = vld [vmem:[#allocation13 + $0x70] sm:$0xff]
    %v1913 = vld [vmem:[#allocation13 + $0x78] sm:$0xff]
    %v1914 = vld [vmem:[#allocation14] sm:$0xff]
    %v1915 = vld [vmem:[#allocation14 + $0x8] sm:$0xff]
    %v1916 = vld [vmem:[#allocation14 + $0x10] sm:$0xff]
    %v1917 = vld [vmem:[#allocation14 + $0x18] sm:$0xff]
    %v1918 = vld [vmem:[#allocation14 + $0x20] sm:$0xff]
    %v1919 = vld [vmem:[#allocation14 + $0x28] sm:$0xff]
    %v1920 = vld [vmem:[#allocation14 + $0x30] sm:$0xff]
    %v1921 = vld [vmem:[#allocation14 + $0x38] sm:$0xff]
    %v1922 = vld [vmem:[#allocation14 + $0x40] sm:$0xff]
    %v1923 = vld [vmem:[#allocation14 + $0x48] sm:$0xff]
    %v1924 = vld [vmem:[#allocation14 + $0x50] sm:$0xff]
    %v1925 = vld [vmem:[#allocation14 + $0x58] sm:$0xff]
    %v1926 = vld [vmem:[#allocation14 + $0x60] sm:$0xff]
    %v1927 = vld [vmem:[#allocation14 + $0x68] sm:$0xff]
    %v1928 = vld [vmem:[#allocation14 + $0x70] sm:$0xff]
    %v1929 = vld [vmem:[#allocation14 + $0x78] sm:$0xff]
    %v1930 = vld [vmem:[%s10] sm:$0x1]
    %1931 = vmatprep.subr.mxu0 0.0
    %1932 = vmatpush1.msra.mxu0 %v1913
    %1933 = vmatprep.subr.mxu0 0.0
    %1934 = vmatpush1.msra.mxu0 %v1912
    %1935 = vmatprep.subr.mxu0 0.0
    %1936 = vmatpush1.msra.mxu0 %v1911
    %1937 = vmatprep.subr.mxu0 0.0
    %1938 = vmatpush1.msra.mxu0 %v1910
    %1939 = vmatprep.subr.mxu0 0.0
    %1940 = vmatpush1.msra.mxu0 %v1909
    %1941 = vmatprep.subr.mxu0 0.0
    %1942 = vmatpush1.msra.mxu0 %v1908
    %1943 = vmatprep.subr.mxu0 0.0
    %1944 = vmatpush1.msra.mxu0 %v1907
    %1945 = vmatprep.subr.mxu0 0.0
    %1946 = vmatpush1.msra.mxu0 %v1906
    %1947 = vmatprep.subr.mxu0 0.0
    %1948 = vmatpush1.msra.mxu0 %v1905
    %1949 = vmatprep.subr.mxu0 0.0
    %1950 = vmatpush1.msra.mxu0 %v1904
    %1951 = vmatprep.subr.mxu0 0.0
    %1952 = vmatpush1.msra.mxu0 %v1903
    %1953 = vmatprep.subr.mxu0 0.0
    %1954 = vmatpush1.msra.mxu0 %v1902
    %1955 = vmatprep.subr.mxu0 0.0
    %1956 = vmatpush1.msra.mxu0 %v1901
    %1957 = vmatprep.subr.mxu0 0.0
    %1958 = vmatpush1.msra.mxu0 %v1900
    %1959 = vmatprep.subr.mxu0 0.0
    %1960 = vmatpush1.msra.mxu0 %v1899
    %1961 = vmatprep.subr.mxu0 0.0
    %1962 = vmatpush1.msra.mxu0 %v1898
    %1963 = vmatprep.subr.mxu0 0.0
    %1964 = vmatpush2.msra.mxu0 0.0
    %1965 = vmatprep.subr.mxu0 0.0
    %1966 = vmatpush2.msra.mxu0 0.0
    %1967 = vmatprep.subr.mxu0 0.0
    %1968 = vmatpush2.msra.mxu0 0.0
    %1969 = vmatprep.subr.mxu0 0.0
    %1970 = vmatpush2.msra.mxu0 0.0
    %1971 = vmatprep.subr.mxu0 0.0
    %1972 = vmatpush2.msra.mxu0 0.0
    %1973 = vmatprep.subr.mxu0 0.0
    %1974 = vmatpush2.msra.mxu0 0.0
    %1975 = vmatprep.subr.mxu0 0.0
    %1976 = vmatpush2.msra.mxu0 0.0
    %1977 = vmatprep.subr.mxu0 0.0
    %1978 = vmatpush2.msra.mxu0 0.0
    %1979 = vmatprep.subr.mxu0 0.0
    %1980 = vmatpush2.msra.mxu0 0.0
    %1981 = vmatprep.subr.mxu0 0.0
    %1982 = vmatpush2.msra.mxu0 0.0
    %1983 = vmatprep.subr.mxu0 0.0
    %1984 = vmatpush2.msra.mxu0 0.0
    %1985 = vmatprep.subr.mxu0 0.0
    %1986 = vmatpush2.msra.mxu0 0.0
    %1987 = vmatprep.subr.mxu0 0.0
    %1988 = vmatpush2.msra.mxu0 0.0
    %1989 = vmatprep.subr.mxu0 0.0
    %1990 = vmatpush2.msra.mxu0 0.0
    %1991 = vmatprep.subr.mxu0 0.0
    %1992 = vmatpush2.msra.mxu0 0.0
    %1993 = vmatprep.subr.mxu0 0.0
    %1994 = vmatpush2.msra.mxu0 0.0
    %1995 = vmatprep.mubr.f32.mxu0 0.0
    %1996 = vmatmul.mubr.f32.gmra.mxu0 %v1882
    %v1997 = vpop.f32.mrf.mxu0
    %v1998 = vadd.f32 0.0, %v1997
    %v1999 = vpop.f32.mrf.mxu0
    %2000 = vmatprep.mubr.f32.mxu0 0.0
    %2001 = vmatmul.mubr.f32.gmra.mxu0 %v1883
    %v2002 = vpop.f32.mrf.mxu0
    %v2003 = vadd.f32 0.0, %v2002
    %v2004 = vpop.f32.mrf.mxu0
    %2005 = vmatprep.mubr.f32.mxu0 0.0
    %2006 = vmatmul.mubr.f32.gmra.mxu0 %v1884
    %v2007 = vpop.f32.mrf.mxu0
    %v2008 = vadd.f32 0.0, %v2007
    %v2009 = vpop.f32.mrf.mxu0
    %2010 = vmatprep.mubr.f32.mxu0 0.0
    %2011 = vmatmul.mubr.f32.gmra.mxu0 %v1885
    %v2012 = vpop.f32.mrf.mxu0
    %v2013 = vadd.f32 0.0, %v2012
    %v2014 = vpop.f32.mrf.mxu0
    %2015 = vmatprep.mubr.f32.mxu0 0.0
    %2016 = vmatmul.mubr.f32.gmra.mxu0 %v1886
    %v2017 = vpop.f32.mrf.mxu0
    %v2018 = vadd.f32 0.0, %v2017
    %v2019 = vpop.f32.mrf.mxu0
    %2020 = vmatprep.mubr.f32.mxu0 0.0
    %2021 = vmatmul.mubr.f32.gmra.mxu0 %v1887
    %v2022 = vpop.f32.mrf.mxu0
    %v2023 = vadd.f32 0.0, %v2022
    %v2024 = vpop.f32.mrf.mxu0
    %2025 = vmatprep.mubr.f32.mxu0 0.0
    %2026 = vmatmul.mubr.f32.gmra.mxu0 %v1888
    %v2027 = vpop.f32.mrf.mxu0
    %v2028 = vadd.f32 0.0, %v2027
    %v2029 = vpop.f32.mrf.mxu0
    %2030 = vmatprep.mubr.f32.mxu0 0.0
    %2031 = vmatmul.mubr.f32.gmra.mxu0 %v1889
    %v2032 = vpop.f32.mrf.mxu0
    %v2033 = vadd.f32 0.0, %v2032
    %v2034 = vpop.f32.mrf.mxu0
    %2035 = vmatprep.mubr.f32.mxu0 0.0
    %2036 = vmatmul.mubr.f32.gmra.mxu0 %v1890
    %v2037 = vpop.f32.mrf.mxu0
    %v2038 = vadd.f32 0.0, %v2037
    %v2039 = vpop.f32.mrf.mxu0
    %2040 = vmatprep.mubr.f32.mxu0 0.0
    %2041 = vmatmul.mubr.f32.gmra.mxu0 %v1891
    %v2042 = vpop.f32.mrf.mxu0
    %v2043 = vadd.f32 0.0, %v2042
    %v2044 = vpop.f32.mrf.mxu0
    %2045 = vmatprep.mubr.f32.mxu0 0.0
    %2046 = vmatmul.mubr.f32.gmra.mxu0 %v1892
    %v2047 = vpop.f32.mrf.mxu0
    %v2048 = vadd.f32 0.0, %v2047
    %v2049 = vpop.f32.mrf.mxu0
    %2050 = vmatprep.mubr.f32.mxu0 0.0
    %2051 = vmatmul.mubr.f32.gmra.mxu0 %v1893
    %v2052 = vpop.f32.mrf.mxu0
    %v2053 = vadd.f32 0.0, %v2052
    %v2054 = vpop.f32.mrf.mxu0
    %2055 = vmatprep.mubr.f32.mxu0 0.0
    %2056 = vmatmul.mubr.f32.gmra.mxu0 %v1894
    %v2057 = vpop.f32.mrf.mxu0
    %v2058 = vadd.f32 0.0, %v2057
    %v2059 = vpop.f32.mrf.mxu0
    %2060 = vmatprep.mubr.f32.mxu0 0.0
    %2061 = vmatmul.mubr.f32.gmra.mxu0 %v1895
    %v2062 = vpop.f32.mrf.mxu0
    %v2063 = vadd.f32 0.0, %v2062
    %v2064 = vpop.f32.mrf.mxu0
    %2065 = vmatprep.mubr.f32.mxu0 0.0
    %2066 = vmatmul.mubr.f32.gmra.mxu0 %v1896
    %v2067 = vpop.f32.mrf.mxu0
    %v2068 = vadd.f32 0.0, %v2067
    %v2069 = vpop.f32.mrf.mxu0
    %2070 = vmatprep.mubr.f32.mxu0 0.0
    %2071 = vmatmul.mubr.f32.gmra.mxu0 %v1897
    %v2072 = vpop.f32.mrf.mxu0
    %v2073 = vadd.f32 0.0, %v2072
    %v2074 = vpop.f32.mrf.mxu0
    %2075 = vdwg.mxu0
    %2076 = vmatprep.subr.mxu0 0.0
    %2077 = vmatpush1.msra.mxu0 %v1929
    %2078 = vmatprep.subr.mxu0 0.0
    %2079 = vmatpush1.msra.mxu0 %v1928
    %2080 = vmatprep.subr.mxu0 0.0
    %2081 = vmatpush1.msra.mxu0 %v1927
    %2082 = vmatprep.subr.mxu0 0.0
    %2083 = vmatpush1.msra.mxu0 %v1926
    %2084 = vmatprep.subr.mxu0 0.0
    %2085 = vmatpush1.msra.mxu0 %v1925
    %2086 = vmatprep.subr.mxu0 0.0
    %2087 = vmatpush1.msra.mxu0 %v1924
    %2088 = vmatprep.subr.mxu0 0.0
    %2089 = vmatpush1.msra.mxu0 %v1923
    %2090 = vmatprep.subr.mxu0 0.0
    %2091 = vmatpush1.msra.mxu0 %v1922
    %2092 = vmatprep.subr.mxu0 0.0
    %2093 = vmatpush1.msra.mxu0 %v1921
    %2094 = vmatprep.subr.mxu0 0.0
    %2095 = vmatpush1.msra.mxu0 %v1920
    %2096 = vmatprep.subr.mxu0 0.0
    %2097 = vmatpush1.msra.mxu0 %v1919
    %2098 = vmatprep.subr.mxu0 0.0
    %2099 = vmatpush1.msra.mxu0 %v1918
    %2100 = vmatprep.subr.mxu0 0.0
    %2101 = vmatpush1.msra.mxu0 %v1917
    %2102 = vmatprep.subr.mxu0 0.0
    %2103 = vmatpush1.msra.mxu0 %v1916
    %2104 = vmatprep.subr.mxu0 0.0
    %2105 = vmatpush1.msra.mxu0 %v1915
    %2106 = vmatprep.subr.mxu0 0.0
    %2107 = vmatpush1.msra.mxu0 %v1914
    %2108 = vmatprep.subr.mxu0 0.0
    %2109 = vmatpush2.msra.mxu0 0.0
    %2110 = vmatprep.subr.mxu0 0.0
    %2111 = vmatpush2.msra.mxu0 0.0
    %2112 = vmatprep.subr.mxu0 0.0
    %2113 = vmatpush2.msra.mxu0 0.0
    %2114 = vmatprep.subr.mxu0 0.0
    %2115 = vmatpush2.msra.mxu0 0.0
    %2116 = vmatprep.subr.mxu0 0.0
    %2117 = vmatpush2.msra.mxu0 0.0
    %2118 = vmatprep.subr.mxu0 0.0
    %2119 = vmatpush2.msra.mxu0 0.0
    %2120 = vmatprep.subr.mxu0 0.0
    %2121 = vmatpush2.msra.mxu0 0.0
    %2122 = vmatprep.subr.mxu0 0.0
    %2123 = vmatpush2.msra.mxu0 0.0
    %2124 = vmatprep.subr.mxu0 0.0
    %2125 = vmatpush2.msra.mxu0 0.0
    %2126 = vmatprep.subr.mxu0 0.0
    %2127 = vmatpush2.msra.mxu0 0.0
    %2128 = vmatprep.subr.mxu0 0.0
    %2129 = vmatpush2.msra.mxu0 0.0
    %2130 = vmatprep.subr.mxu0 0.0
    %2131 = vmatpush2.msra.mxu0 0.0
    %2132 = vmatprep.subr.mxu0 0.0
    %2133 = vmatpush2.msra.mxu0 0.0
    %2134 = vmatprep.subr.mxu0 0.0
    %2135 = vmatpush2.msra.mxu0 0.0
    %2136 = vmatprep.subr.mxu0 0.0
    %2137 = vmatpush2.msra.mxu0 0.0
    %2138 = vmatprep.subr.mxu0 0.0
    %2139 = vmatpush2.msra.mxu0 0.0
    %2140 = vmatprep.mubr.f32.mxu0 0.0
    %2141 = vmatmul.mubr.f32.gmra.mxu0 %v1882
    %v2142 = vpop.f32.mrf.mxu0
    %v2143 = vadd.f32 0.0, %v2142
    %v2144 = vpop.f32.mrf.mxu0
    %2145 = vmatprep.mubr.f32.mxu0 0.0
    %2146 = vmatmul.mubr.f32.gmra.mxu0 %v1883
    %v2147 = vpop.f32.mrf.mxu0
    %v2148 = vadd.f32 0.0, %v2147
    %v2149 = vpop.f32.mrf.mxu0
    %2150 = vmatprep.mubr.f32.mxu0 0.0
    %2151 = vmatmul.mubr.f32.gmra.mxu0 %v1884
    %v2152 = vpop.f32.mrf.mxu0
    %v2153 = vadd.f32 0.0, %v2152
    %v2154 = vpop.f32.mrf.mxu0
    %2155 = vmatprep.mubr.f32.mxu0 0.0
    %2156 = vmatmul.mubr.f32.gmra.mxu0 %v1885
    %v2157 = vpop.f32.mrf.mxu0
    %v2158 = vadd.f32 0.0, %v2157
    %v2159 = vpop.f32.mrf.mxu0
    %2160 = vmatprep.mubr.f32.mxu0 0.0
    %2161 = vmatmul.mubr.f32.gmra.mxu0 %v1886
    %v2162 = vpop.f32.mrf.mxu0
    %v2163 = vadd.f32 0.0, %v2162
    %v2164 = vpop.f32.mrf.mxu0
    %2165 = vmatprep.mubr.f32.mxu0 0.0
    %2166 = vmatmul.mubr.f32.gmra.mxu0 %v1887
    %v2167 = vpop.f32.mrf.mxu0
    %v2168 = vadd.f32 0.0, %v2167
    %v2169 = vpop.f32.mrf.mxu0
    %2170 = vmatprep.mubr.f32.mxu0 0.0
    %2171 = vmatmul.mubr.f32.gmra.mxu0 %v1888
    %v2172 = vpop.f32.mrf.mxu0
    %v2173 = vadd.f32 0.0, %v2172
    %v2174 = vpop.f32.mrf.mxu0
    %2175 = vmatprep.mubr.f32.mxu0 0.0
    %2176 = vmatmul.mubr.f32.gmra.mxu0 %v1889
    %v2177 = vpop.f32.mrf.mxu0
    %v2178 = vadd.f32 0.0, %v2177
    %v2179 = vpop.f32.mrf.mxu0
    %2180 = vmatprep.mubr.f32.mxu0 0.0
    %2181 = vmatmul.mubr.f32.gmra.mxu0 %v1890
    %v2182 = vpop.f32.mrf.mxu0
    %v2183 = vadd.f32 0.0, %v2182
    %v2184 = vpop.f32.mrf.mxu0
    %2185 = vmatprep.mubr.f32.mxu0 0.0
    %2186 = vmatmul.mubr.f32.gmra.mxu0 %v1891
    %v2187 = vpop.f32.mrf.mxu0
    %v2188 = vadd.f32 0.0, %v2187
    %v2189 = vpop.f32.mrf.mxu0
    %2190 = vmatprep.mubr.f32.mxu0 0.0
    %2191 = vmatmul.mubr.f32.gmra.mxu0 %v1892
    %v2192 = vpop.f32.mrf.mxu0
    %v2193 = vadd.f32 0.0, %v2192
    %v2194 = vpop.f32.mrf.mxu0
    %2195 = vmatprep.mubr.f32.mxu0 0.0
    %2196 = vmatmul.mubr.f32.gmra.mxu0 %v1893
    %v2197 = vpop.f32.mrf.mxu0
    %v2198 = vadd.f32 0.0, %v2197
    %v2199 = vpop.f32.mrf.mxu0
    %2200 = vmatprep.mubr.f32.mxu0 0.0
    %2201 = vmatmul.mubr.f32.gmra.mxu0 %v1894
    %v2202 = vpop.f32.mrf.mxu0
    %v2203 = vadd.f32 0.0, %v2202
    %v2204 = vpop.f32.mrf.mxu0
    %2205 = vmatprep.mubr.f32.mxu0 0.0
    %2206 = vmatmul.mubr.f32.gmra.mxu0 %v1895
    %v2207 = vpop.f32.mrf.mxu0
    %v2208 = vadd.f32 0.0, %v2207
    %v2209 = vpop.f32.mrf.mxu0
    %2210 = vmatprep.mubr.f32.mxu0 0.0
    %2211 = vmatmul.mubr.f32.gmra.mxu0 %v1896
    %v2212 = vpop.f32.mrf.mxu0
    %v2213 = vadd.f32 0.0, %v2212
    %v2214 = vpop.f32.mrf.mxu0
    %2215 = vmatprep.mubr.f32.mxu0 0.0
    %2216 = vmatmul.mubr.f32.gmra.mxu0 %v1897
    %v2217 = vpop.f32.mrf.mxu0
    %v2218 = vadd.f32 0.0, %v2217
    %v2219 = vpop.f32.mrf.mxu0
    %2220 = vdwg.mxu0
    %2221 = vmatprep.subr.mxu0 0.0
    %2222 = vmatpush1.xpose.msra.mxu0 %v2218
    %2223 = vmatprep.subr.mxu0 0.0
    %2224 = vmatpush1.xpose.msra.mxu0 %v2213
    %2225 = vmatprep.subr.mxu0 0.0
    %2226 = vmatpush1.xpose.msra.mxu0 %v2208
    %2227 = vmatprep.subr.mxu0 0.0
    %2228 = vmatpush1.xpose.msra.mxu0 %v2203
    %2229 = vmatprep.subr.mxu0 0.0
    %2230 = vmatpush1.xpose.msra.mxu0 %v2198
    %2231 = vmatprep.subr.mxu0 0.0
    %2232 = vmatpush1.xpose.msra.mxu0 %v2193
    %2233 = vmatprep.subr.mxu0 0.0
    %2234 = vmatpush1.xpose.msra.mxu0 %v2188
    %2235 = vmatprep.subr.mxu0 0.0
    %2236 = vmatpush1.xpose.msra.mxu0 %v2183
    %2237 = vmatprep.subr.mxu0 0.0
    %2238 = vmatpush1.xpose.msra.mxu0 %v2178
    %2239 = vmatprep.subr.mxu0 0.0
    %2240 = vmatpush1.xpose.msra.mxu0 %v2173
    %2241 = vmatprep.subr.mxu0 0.0
    %2242 = vmatpush1.xpose.msra.mxu0 %v2168
    %2243 = vmatprep.subr.mxu0 0.0
    %2244 = vmatpush1.xpose.msra.mxu0 %v2163
    %2245 = vmatprep.subr.mxu0 0.0
    %2246 = vmatpush1.xpose.msra.mxu0 %v2158
    %2247 = vmatprep.subr.mxu0 0.0
    %2248 = vmatpush1.xpose.msra.mxu0 %v2153
    %2249 = vmatprep.subr.mxu0 0.0
    %2250 = vmatpush1.xpose.msra.mxu0 %v2148
    %2251 = vmatprep.subr.mxu0 0.0
    %2252 = vmatpush1.xpose.msra.mxu0 %v2143
    %2253 = vmatprep.subr.mxu0 0.0
    %2254 = vmatpush2.xpose.msra.mxu0 0.0
    %2255 = vmatprep.subr.mxu0 0.0
    %2256 = vmatpush2.xpose.msra.mxu0 0.0
    %2257 = vmatprep.subr.mxu0 0.0
    %2258 = vmatpush2.xpose.msra.mxu0 0.0
    %2259 = vmatprep.subr.mxu0 0.0
    %2260 = vmatpush2.xpose.msra.mxu0 0.0
    %2261 = vmatprep.subr.mxu0 0.0
    %2262 = vmatpush2.xpose.msra.mxu0 0.0
    %2263 = vmatprep.subr.mxu0 0.0
    %2264 = vmatpush2.xpose.msra.mxu0 0.0
    %2265 = vmatprep.subr.mxu0 0.0
    %2266 = vmatpush2.xpose.msra.mxu0 0.0
    %2267 = vmatprep.subr.mxu0 0.0
    %2268 = vmatpush2.xpose.msra.mxu0 0.0
    %2269 = vmatprep.subr.mxu0 0.0
    %2270 = vmatpush2.xpose.msra.mxu0 0.0
    %2271 = vmatprep.subr.mxu0 0.0
    %2272 = vmatpush2.xpose.msra.mxu0 0.0
    %2273 = vmatprep.subr.mxu0 0.0
    %2274 = vmatpush2.xpose.msra.mxu0 0.0
    %2275 = vmatprep.subr.mxu0 0.0
    %2276 = vmatpush2.xpose.msra.mxu0 0.0
    %2277 = vmatprep.subr.mxu0 0.0
    %2278 = vmatpush2.xpose.msra.mxu0 0.0
    %2279 = vmatprep.subr.mxu0 0.0
    %2280 = vmatpush2.xpose.msra.mxu0 0.0
    %2281 = vmatprep.subr.mxu0 0.0
    %2282 = vmatpush2.xpose.msra.mxu0 0.0
    %2283 = vmatprep.subr.mxu0 0.0
    %2284 = vmatpush2.xpose.msra.mxu0 0.0
    %2285 = vmatprep.mubr.f32.mxu0 0.0
    %2286 = vmatmul.mubr.f32.gmra.mxu0 %v1998
    %v2287 = vpop.f32.mrf.mxu0
    %v2288 = vadd.f32 0.0, %v2287
    %v2289 = vpop.f32.mrf.mxu0
    %2290 = vmatprep.mubr.f32.mxu0 0.0
    %2291 = vmatmul.mubr.f32.gmra.mxu0 %v2003
    %v2292 = vpop.f32.mrf.mxu0
    %v2293 = vadd.f32 0.0, %v2292
    %v2294 = vpop.f32.mrf.mxu0
    %2295 = vmatprep.mubr.f32.mxu0 0.0
    %2296 = vmatmul.mubr.f32.gmra.mxu0 %v2008
    %v2297 = vpop.f32.mrf.mxu0
    %v2298 = vadd.f32 0.0, %v2297
    %v2299 = vpop.f32.mrf.mxu0
    %2300 = vmatprep.mubr.f32.mxu0 0.0
    %2301 = vmatmul.mubr.f32.gmra.mxu0 %v2013
    %v2302 = vpop.f32.mrf.mxu0
    %v2303 = vadd.f32 0.0, %v2302
    %v2304 = vpop.f32.mrf.mxu0
    %2305 = vmatprep.mubr.f32.mxu0 0.0
    %2306 = vmatmul.mubr.f32.gmra.mxu0 %v2018
    %v2307 = vpop.f32.mrf.mxu0
    %v2308 = vadd.f32 0.0, %v2307
    %v2309 = vpop.f32.mrf.mxu0
    %2310 = vmatprep.mubr.f32.mxu0 0.0
    %2311 = vmatmul.mubr.f32.gmra.mxu0 %v2023
    %v2312 = vpop.f32.mrf.mxu0
    %v2313 = vadd.f32 0.0, %v2312
    %v2314 = vpop.f32.mrf.mxu0
    %2315 = vmatprep.mubr.f32.mxu0 0.0
    %2316 = vmatmul.mubr.f32.gmra.mxu0 %v2028
    %v2317 = vpop.f32.mrf.mxu0
    %v2318 = vadd.f32 0.0, %v2317
    %v2319 = vpop.f32.mrf.mxu0
    %2320 = vmatprep.mubr.f32.mxu0 0.0
    %2321 = vmatmul.mubr.f32.gmra.mxu0 %v2033
    %v2322 = vpop.f32.mrf.mxu0
    %v2323 = vadd.f32 0.0, %v2322
    %v2324 = vpop.f32.mrf.mxu0
    %2325 = vmatprep.mubr.f32.mxu0 0.0
    %2326 = vmatmul.mubr.f32.gmra.mxu0 %v2038
    %v2327 = vpop.f32.mrf.mxu0
    %v2328 = vadd.f32 0.0, %v2327
    %v2329 = vpop.f32.mrf.mxu0
    %2330 = vmatprep.mubr.f32.mxu0 0.0
    %2331 = vmatmul.mubr.f32.gmra.mxu0 %v2043
    %v2332 = vpop.f32.mrf.mxu0
    %v2333 = vadd.f32 0.0, %v2332
    %v2334 = vpop.f32.mrf.mxu0
    %2335 = vmatprep.mubr.f32.mxu0 0.0
    %2336 = vmatmul.mubr.f32.gmra.mxu0 %v2048
    %v2337 = vpop.f32.mrf.mxu0
    %v2338 = vadd.f32 0.0, %v2337
    %v2339 = vpop.f32.mrf.mxu0
    %2340 = vmatprep.mubr.f32.mxu0 0.0
    %2341 = vmatmul.mubr.f32.gmra.mxu0 %v2053
    %v2342 = vpop.f32.mrf.mxu0
    %v2343 = vadd.f32 0.0, %v2342
    %v2344 = vpop.f32.mrf.mxu0
    %2345 = vmatprep.mubr.f32.mxu0 0.0
    %2346 = vmatmul.mubr.f32.gmra.mxu0 %v2058
    %v2347 = vpop.f32.mrf.mxu0
    %v2348 = vadd.f32 0.0, %v2347
    %v2349 = vpop.f32.mrf.mxu0
    %2350 = vmatprep.mubr.f32.mxu0 0.0
    %2351 = vmatmul.mubr.f32.gmra.mxu0 %v2063
    %v2352 = vpop.f32.mrf.mxu0
    %v2353 = vadd.f32 0.0, %v2352
    %v2354 = vpop.f32.mrf.mxu0
    %2355 = vmatprep.mubr.f32.mxu0 0.0
    %2356 = vmatmul.mubr.f32.gmra.mxu0 %v2068
    %v2357 = vpop.f32.mrf.mxu0
    %v2358 = vadd.f32 0.0, %v2357
    %v2359 = vpop.f32.mrf.mxu0
    %2360 = vmatprep.mubr.f32.mxu0 0.0
    %2361 = vmatmul.mubr.f32.gmra.mxu0 %v2073
    %v2362 = vpop.f32.mrf.mxu0
    %v2363 = vadd.f32 0.0, %v2362
    %v2364 = vpop.f32.mrf.mxu0
    %2365 = vdwg.mxu0
    %vm2366 = vcmp.gt.f32.partialorder %v2288, 0.0
    %vm2367 = vcmp.gt.f32.partialorder %v2293, 0.0
    %vm2368 = vcmp.gt.f32.partialorder %v2298, 0.0
    %vm2369 = vcmp.gt.f32.partialorder %v2303, 0.0
    %vm2370 = vcmp.gt.f32.partialorder %v2308, 0.0
    %vm2371 = vcmp.gt.f32.partialorder %v2313, 0.0
    %vm2372 = vcmp.gt.f32.partialorder %v2318, 0.0
    %vm2373 = vcmp.gt.f32.partialorder %v2323, 0.0
    %vm2374 = vcmp.gt.f32.partialorder %v2328, 0.0
    %vm2375 = vcmp.gt.f32.partialorder %v2333, 0.0
    %vm2376 = vcmp.gt.f32.partialorder %v2338, 0.0
    %vm2377 = vcmp.gt.f32.partialorder %v2343, 0.0
    %vm2378 = vcmp.gt.f32.partialorder %v2348, 0.0
    %vm2379 = vcmp.gt.f32.partialorder %v2353, 0.0
    %vm2380 = vcmp.gt.f32.partialorder %v2358, 0.0
    %vm2381 = vcmp.gt.f32.partialorder %v2363, 0.0
    %v2382 = vmul.f32 %v2288, 0.2
    %v2383 = vmul.f32 %v2293, 0.2
    %v2384 = vmul.f32 %v2298, 0.2
    %v2385 = vmul.f32 %v2303, 0.2
    %v2386 = vmul.f32 %v2308, 0.2
    %v2387 = vmul.f32 %v2313, 0.2
    %v2388 = vmul.f32 %v2318, 0.2
    %v2389 = vmul.f32 %v2323, 0.2
    %v2390 = vmul.f32 %v2328, 0.2
    %v2391 = vmul.f32 %v2333, 0.2
    %v2392 = vmul.f32 %v2338, 0.2
    %v2393 = vmul.f32 %v2343, 0.2
    %v2394 = vmul.f32 %v2348, 0.2
    %v2395 = vmul.f32 %v2353, 0.2
    %v2396 = vmul.f32 %v2358, 0.2
    %v2397 = vmul.f32 %v2363, 0.2
    %v2398 = vsel %vm2366, %v2288, %v2382
    %v2399 = vsel %vm2367, %v2293, %v2383
    %v2400 = vsel %vm2368, %v2298, %v2384
    %v2401 = vsel %vm2369, %v2303, %v2385
    %v2402 = vsel %vm2370, %v2308, %v2386
    %v2403 = vsel %vm2371, %v2313, %v2387
    %v2404 = vsel %vm2372, %v2318, %v2388
    %v2405 = vsel %vm2373, %v2323, %v2389
    %v2406 = vsel %vm2374, %v2328, %v2390
    %v2407 = vsel %vm2375, %v2333, %v2391
    %v2408 = vsel %vm2376, %v2338, %v2392
    %v2409 = vsel %vm2377, %v2343, %v2393
    %v2410 = vsel %vm2378, %v2348, %v2394
    %v2411 = vsel %vm2379, %v2353, %v2395
    %v2412 = vsel %vm2380, %v2358, %v2396
    %v2413 = vsel %vm2381, %v2363, %v2397
    %v2414 = vadd.f32 %v2398, %v148
    %v2415 = vadd.f32 %v2399, %v149
    %v2416 = vadd.f32 %v2400, %v150
    %v2417 = vadd.f32 %v2401, %v151
    %v2418 = vadd.f32 %v2402, %v152
    %v2419 = vadd.f32 %v2403, %v153
    %v2420 = vadd.f32 %v2404, %v154
    %v2421 = vadd.f32 %v2405, %v155
    %v2422 = vadd.f32 %v2406, %v156
    %v2423 = vadd.f32 %v2407, %v157
    %v2424 = vadd.f32 %v2408, %v158
    %v2425 = vadd.f32 %v2409, %v159
    %v2426 = vadd.f32 %v2410, %v160
    %v2427 = vadd.f32 %v2411, %v161
    %v2428 = vadd.f32 %v2412, %v162
    %v2429 = vadd.f32 %v2413, %v163
    %2430 = vmax.xlane.f32.xlu0 %v2414
    %v2431 = vpop.xlane.xlu0 %2430
    %2432 = vmax.xlane.f32.xlu0 %v2415
    %v2433 = vpop.xlane.xlu0 %2432
    %2434 = vmax.xlane.f32.xlu0 %v2416
    %v2435 = vpop.xlane.xlu0 %2434
    %2436 = vmax.xlane.f32.xlu0 %v2417
    %v2437 = vpop.xlane.xlu0 %2436
    %2438 = vmax.xlane.f32.xlu0 %v2418
    %v2439 = vpop.xlane.xlu0 %2438
    %2440 = vmax.xlane.f32.xlu0 %v2419
    %v2441 = vpop.xlane.xlu0 %2440
    %2442 = vmax.xlane.f32.xlu0 %v2420
    %v2443 = vpop.xlane.xlu0 %2442
    %2444 = vmax.xlane.f32.xlu0 %v2421
    %v2445 = vpop.xlane.xlu0 %2444
    %2446 = vmax.xlane.f32.xlu0 %v2422
    %v2447 = vpop.xlane.xlu0 %2446
    %2448 = vmax.xlane.f32.xlu0 %v2423
    %v2449 = vpop.xlane.xlu0 %2448
    %2450 = vmax.xlane.f32.xlu0 %v2424
    %v2451 = vpop.xlane.xlu0 %2450
    %2452 = vmax.xlane.f32.xlu0 %v2425
    %v2453 = vpop.xlane.xlu0 %2452
    %2454 = vmax.xlane.f32.xlu0 %v2426
    %v2455 = vpop.xlane.xlu0 %2454
    %2456 = vmax.xlane.f32.xlu0 %v2427
    %v2457 = vpop.xlane.xlu0 %2456
    %2458 = vmax.xlane.f32.xlu0 %v2428
    %v2459 = vpop.xlane.xlu0 %2458
    %2460 = vmax.xlane.f32.xlu0 %v2429
    %v2461 = vpop.xlane.xlu0 %2460
    %v2462 = vsub.f32 %v2414, %v2431
    %v2463 = vsub.f32 %v2415, %v2433
    %v2464 = vsub.f32 %v2416, %v2435
    %v2465 = vsub.f32 %v2417, %v2437
    %v2466 = vsub.f32 %v2418, %v2439
    %v2467 = vsub.f32 %v2419, %v2441
    %v2468 = vsub.f32 %v2420, %v2443
    %v2469 = vsub.f32 %v2421, %v2445
    %v2470 = vsub.f32 %v2422, %v2447
    %v2471 = vsub.f32 %v2423, %v2449
    %v2472 = vsub.f32 %v2424, %v2451
    %v2473 = vsub.f32 %v2425, %v2453
    %v2474 = vsub.f32 %v2426, %v2455
    %v2475 = vsub.f32 %v2427, %v2457
    %v2476 = vsub.f32 %v2428, %v2459
    %v2477 = vsub.f32 %v2429, %v2461
    %v2478 = vmul.f32 %v2462, 1.442695
    %v2479 = vpow.pop %v2478
    %v2480 = vmul.f32 %v2463, 1.442695
    %v2481 = vpow.pop %v2480
    %v2482 = vmul.f32 %v2464, 1.442695
    %v2483 = vpow.pop %v2482
    %v2484 = vmul.f32 %v2465, 1.442695
    %v2485 = vpow.pop %v2484
    %v2486 = vmul.f32 %v2466, 1.442695
    %v2487 = vpow.pop %v2486
    %v2488 = vmul.f32 %v2467, 1.442695
    %v2489 = vpow.pop %v2488
    %v2490 = vmul.f32 %v2468, 1.442695
    %v2491 = vpow.pop %v2490
    %v2492 = vmul.f32 %v2469, 1.442695
    %v2493 = vpow.pop %v2492
    %v2494 = vmul.f32 %v2470, 1.442695
    %v2495 = vpow.pop %v2494
    %v2496 = vmul.f32 %v2471, 1.442695
    %v2497 = vpow.pop %v2496
    %v2498 = vmul.f32 %v2472, 1.442695
    %v2499 = vpow.pop %v2498
    %v2500 = vmul.f32 %v2473, 1.442695
    %v2501 = vpow.pop %v2500
    %v2502 = vmul.f32 %v2474, 1.442695
    %v2503 = vpow.pop %v2502
    %v2504 = vmul.f32 %v2475, 1.442695
    %v2505 = vpow.pop %v2504
    %v2506 = vmul.f32 %v2476, 1.442695
    %v2507 = vpow.pop %v2506
    %v2508 = vmul.f32 %v2477, 1.442695
    %v2509 = vpow.pop %v2508
    %2510 = vadd.xlane.f32.xlu0 %v2479
    %v2511 = vpop.xlane.xlu0 %2510
    %2512 = vadd.xlane.f32.xlu0 %v2481
    %v2513 = vpop.xlane.xlu0 %2512
    %2514 = vadd.xlane.f32.xlu0 %v2483
    %v2515 = vpop.xlane.xlu0 %2514
    %2516 = vadd.xlane.f32.xlu0 %v2485
    %v2517 = vpop.xlane.xlu0 %2516
    %2518 = vadd.xlane.f32.xlu0 %v2487
    %v2519 = vpop.xlane.xlu0 %2518
    %2520 = vadd.xlane.f32.xlu0 %v2489
    %v2521 = vpop.xlane.xlu0 %2520
    %2522 = vadd.xlane.f32.xlu0 %v2491
    %v2523 = vpop.xlane.xlu0 %2522
    %2524 = vadd.xlane.f32.xlu0 %v2493
    %v2525 = vpop.xlane.xlu0 %2524
    %2526 = vadd.xlane.f32.xlu0 %v2495
    %v2527 = vpop.xlane.xlu0 %2526
    %2528 = vadd.xlane.f32.xlu0 %v2497
    %v2529 = vpop.xlane.xlu0 %2528
    %2530 = vadd.xlane.f32.xlu0 %v2499
    %v2531 = vpop.xlane.xlu0 %2530
    %2532 = vadd.xlane.f32.xlu0 %v2501
    %v2533 = vpop.xlane.xlu0 %2532
    %2534 = vadd.xlane.f32.xlu0 %v2503
    %v2535 = vpop.xlane.xlu0 %2534
    %2536 = vadd.xlane.f32.xlu0 %v2505
    %v2537 = vpop.xlane.xlu0 %2536
    %2538 = vadd.xlane.f32.xlu0 %v2507
    %v2539 = vpop.xlane.xlu0 %2538
    %2540 = vadd.xlane.f32.xlu0 %v2509
    %v2541 = vpop.xlane.xlu0 %2540
    %2542 = vmatprep.subr.mxu0 0.0
    %2543 = vmatpush1.msra.mxu0 %v2073
    %2544 = vmatprep.subr.mxu0 0.0
    %2545 = vmatpush1.msra.mxu0 %v2068
    %2546 = vmatprep.subr.mxu0 0.0
    %2547 = vmatpush1.msra.mxu0 %v2063
    %2548 = vmatprep.subr.mxu0 0.0
    %2549 = vmatpush1.msra.mxu0 %v2058
    %2550 = vmatprep.subr.mxu0 0.0
    %2551 = vmatpush1.msra.mxu0 %v2053
    %2552 = vmatprep.subr.mxu0 0.0
    %2553 = vmatpush1.msra.mxu0 %v2048
    %2554 = vmatprep.subr.mxu0 0.0
    %2555 = vmatpush1.msra.mxu0 %v2043
    %2556 = vmatprep.subr.mxu0 0.0
    %2557 = vmatpush1.msra.mxu0 %v2038
    %2558 = vmatprep.subr.mxu0 0.0
    %2559 = vmatpush1.msra.mxu0 %v2033
    %2560 = vmatprep.subr.mxu0 0.0
    %2561 = vmatpush1.msra.mxu0 %v2028
    %2562 = vmatprep.subr.mxu0 0.0
    %2563 = vmatpush1.msra.mxu0 %v2023
    %2564 = vmatprep.subr.mxu0 0.0
    %2565 = vmatpush1.msra.mxu0 %v2018
    %2566 = vmatprep.subr.mxu0 0.0
    %2567 = vmatpush1.msra.mxu0 %v2013
    %2568 = vmatprep.subr.mxu0 0.0
    %2569 = vmatpush1.msra.mxu0 %v2008
    %2570 = vmatprep.subr.mxu0 0.0
    %2571 = vmatpush1.msra.mxu0 %v2003
    %2572 = vmatprep.subr.mxu0 0.0
    %2573 = vmatpush1.msra.mxu0 %v1998
    %2574 = vmatprep.subr.mxu0 0.0
    %2575 = vmatpush2.msra.mxu0 0.0
    %2576 = vmatprep.subr.mxu0 0.0
    %2577 = vmatpush2.msra.mxu0 0.0
    %2578 = vmatprep.subr.mxu0 0.0
    %2579 = vmatpush2.msra.mxu0 0.0
    %2580 = vmatprep.subr.mxu0 0.0
    %2581 = vmatpush2.msra.mxu0 0.0
    %2582 = vmatprep.subr.mxu0 0.0
    %2583 = vmatpush2.msra.mxu0 0.0
    %2584 = vmatprep.subr.mxu0 0.0
    %2585 = vmatpush2.msra.mxu0 0.0
    %2586 = vmatprep.subr.mxu0 0.0
    %2587 = vmatpush2.msra.mxu0 0.0
    %2588 = vmatprep.subr.mxu0 0.0
    %2589 = vmatpush2.msra.mxu0 0.0
    %2590 = vmatprep.subr.mxu0 0.0
    %2591 = vmatpush2.msra.mxu0 0.0
    %2592 = vmatprep.subr.mxu0 0.0
    %2593 = vmatpush2.msra.mxu0 0.0
    %2594 = vmatprep.subr.mxu0 0.0
    %2595 = vmatpush2.msra.mxu0 0.0
    %2596 = vmatprep.subr.mxu0 0.0
    %2597 = vmatpush2.msra.mxu0 0.0
    %2598 = vmatprep.subr.mxu0 0.0
    %2599 = vmatpush2.msra.mxu0 0.0
    %2600 = vmatprep.subr.mxu0 0.0
    %2601 = vmatpush2.msra.mxu0 0.0
    %2602 = vmatprep.subr.mxu0 0.0
    %2603 = vmatpush2.msra.mxu0 0.0
    %2604 = vmatprep.subr.mxu0 0.0
    %2605 = vmatpush2.msra.mxu0 0.0
    %2606 = vmatprep.mubr.f32.mxu0 0.0
    %2607 = vmatmul.mubr.f32.gmra.mxu0 %v2479
    %v2608 = vpop.f32.mrf.mxu0
    %v2609 = vadd.f32 0.0, %v2608
    %v2610 = vpop.f32.mrf.mxu0
    %2611 = vmatprep.mubr.f32.mxu0 0.0
    %2612 = vmatmul.mubr.f32.gmra.mxu0 %v2481
    %v2613 = vpop.f32.mrf.mxu0
    %v2614 = vadd.f32 0.0, %v2613
    %v2615 = vpop.f32.mrf.mxu0
    %2616 = vmatprep.mubr.f32.mxu0 0.0
    %2617 = vmatmul.mubr.f32.gmra.mxu0 %v2483
    %v2618 = vpop.f32.mrf.mxu0
    %v2619 = vadd.f32 0.0, %v2618
    %v2620 = vpop.f32.mrf.mxu0
    %2621 = vmatprep.mubr.f32.mxu0 0.0
    %2622 = vmatmul.mubr.f32.gmra.mxu0 %v2485
    %v2623 = vpop.f32.mrf.mxu0
    %v2624 = vadd.f32 0.0, %v2623
    %v2625 = vpop.f32.mrf.mxu0
    %2626 = vmatprep.mubr.f32.mxu0 0.0
    %2627 = vmatmul.mubr.f32.gmra.mxu0 %v2487
    %v2628 = vpop.f32.mrf.mxu0
    %v2629 = vadd.f32 0.0, %v2628
    %v2630 = vpop.f32.mrf.mxu0
    %2631 = vmatprep.mubr.f32.mxu0 0.0
    %2632 = vmatmul.mubr.f32.gmra.mxu0 %v2489
    %v2633 = vpop.f32.mrf.mxu0
    %v2634 = vadd.f32 0.0, %v2633
    %v2635 = vpop.f32.mrf.mxu0
    %2636 = vmatprep.mubr.f32.mxu0 0.0
    %2637 = vmatmul.mubr.f32.gmra.mxu0 %v2491
    %v2638 = vpop.f32.mrf.mxu0
    %v2639 = vadd.f32 0.0, %v2638
    %v2640 = vpop.f32.mrf.mxu0
    %2641 = vmatprep.mubr.f32.mxu0 0.0
    %2642 = vmatmul.mubr.f32.gmra.mxu0 %v2493
    %v2643 = vpop.f32.mrf.mxu0
    %v2644 = vadd.f32 0.0, %v2643
    %v2645 = vpop.f32.mrf.mxu0
    %2646 = vmatprep.mubr.f32.mxu0 0.0
    %2647 = vmatmul.mubr.f32.gmra.mxu0 %v2495
    %v2648 = vpop.f32.mrf.mxu0
    %v2649 = vadd.f32 0.0, %v2648
    %v2650 = vpop.f32.mrf.mxu0
    %2651 = vmatprep.mubr.f32.mxu0 0.0
    %2652 = vmatmul.mubr.f32.gmra.mxu0 %v2497
    %v2653 = vpop.f32.mrf.mxu0
    %v2654 = vadd.f32 0.0, %v2653
    %v2655 = vpop.f32.mrf.mxu0
    %2656 = vmatprep.mubr.f32.mxu0 0.0
    %2657 = vmatmul.mubr.f32.gmra.mxu0 %v2499
    %v2658 = vpop.f32.mrf.mxu0
    %v2659 = vadd.f32 0.0, %v2658
    %v2660 = vpop.f32.mrf.mxu0
    %2661 = vmatprep.mubr.f32.mxu0 0.0
    %2662 = vmatmul.mubr.f32.gmra.mxu0 %v2501
    %v2663 = vpop.f32.mrf.mxu0
    %v2664 = vadd.f32 0.0, %v2663
    %v2665 = vpop.f32.mrf.mxu0
    %2666 = vmatprep.mubr.f32.mxu0 0.0
    %2667 = vmatmul.mubr.f32.gmra.mxu0 %v2503
    %v2668 = vpop.f32.mrf.mxu0
    %v2669 = vadd.f32 0.0, %v2668
    %v2670 = vpop.f32.mrf.mxu0
    %2671 = vmatprep.mubr.f32.mxu0 0.0
    %2672 = vmatmul.mubr.f32.gmra.mxu0 %v2505
    %v2673 = vpop.f32.mrf.mxu0
    %v2674 = vadd.f32 0.0, %v2673
    %v2675 = vpop.f32.mrf.mxu0
    %2676 = vmatprep.mubr.f32.mxu0 0.0
    %2677 = vmatmul.mubr.f32.gmra.mxu0 %v2507
    %v2678 = vpop.f32.mrf.mxu0
    %v2679 = vadd.f32 0.0, %v2678
    %v2680 = vpop.f32.mrf.mxu0
    %2681 = vmatprep.mubr.f32.mxu0 0.0
    %2682 = vmatmul.mubr.f32.gmra.mxu0 %v2509
    %v2683 = vpop.f32.mrf.mxu0
    %v2684 = vadd.f32 0.0, %v2683
    %v2685 = vpop.f32.mrf.mxu0
    %2686 = vdwg.mxu0
    %v2687 = vrcp.pop %v2511
    %v2688 = vmul.f32 %v2609, %v2687
    %v2689 = vrcp.pop %v2513
    %v2690 = vmul.f32 %v2614, %v2689
    %v2691 = vrcp.pop %v2515
    %v2692 = vmul.f32 %v2619, %v2691
    %v2693 = vrcp.pop %v2517
    %v2694 = vmul.f32 %v2624, %v2693
    %v2695 = vrcp.pop %v2519
    %v2696 = vmul.f32 %v2629, %v2695
    %v2697 = vrcp.pop %v2521
    %v2698 = vmul.f32 %v2634, %v2697
    %v2699 = vrcp.pop %v2523
    %v2700 = vmul.f32 %v2639, %v2699
    %v2701 = vrcp.pop %v2525
    %v2702 = vmul.f32 %v2644, %v2701
    %v2703 = vrcp.pop %v2527
    %v2704 = vmul.f32 %v2649, %v2703
    %v2705 = vrcp.pop %v2529
    %v2706 = vmul.f32 %v2654, %v2705
    %v2707 = vrcp.pop %v2531
    %v2708 = vmul.f32 %v2659, %v2707
    %v2709 = vrcp.pop %v2533
    %v2710 = vmul.f32 %v2664, %v2709
    %v2711 = vrcp.pop %v2535
    %v2712 = vmul.f32 %v2669, %v2711
    %v2713 = vrcp.pop %v2537
    %v2714 = vmul.f32 %v2674, %v2713
    %v2715 = vrcp.pop %v2539
    %v2716 = vmul.f32 %v2679, %v2715
    %v2717 = vrcp.pop %v2541
    %v2718 = vmul.f32 %v2684, %v2717
    %v2720 = vlaneseq
    %v2721 = vshrl.u32 %v2720, 7
    %v2722 = vsub.s32 0, %v2721
    %v2723 = vrot.slane %v1930, %v2722
    %v2725 = vadd.f32 %v2688, %v2723
    %v2726 = vadd.f32 %v2690, %v2723
    %v2727 = vadd.f32 %v2692, %v2723
    %v2728 = vadd.f32 %v2694, %v2723
    %v2729 = vadd.f32 %v2696, %v2723
    %v2730 = vadd.f32 %v2698, %v2723
    %v2731 = vadd.f32 %v2700, %v2723
    %v2732 = vadd.f32 %v2702, %v2723
    %v2733 = vadd.f32 %v2704, %v2723
    %v2734 = vadd.f32 %v2706, %v2723
    %v2735 = vadd.f32 %v2708, %v2723
    %v2736 = vadd.f32 %v2710, %v2723
    %v2737 = vadd.f32 %v2712, %v2723
    %v2738 = vadd.f32 %v2714, %v2723
    %v2739 = vadd.f32 %v2716, %v2723
    %v2740 = vadd.f32 %v2718, %v2723
    %2741 = vst [vmem:[#allocation16] sm:$0xff] %v2725
    %2742 = vst [vmem:[#allocation16 + $0x8] sm:$0xff] %v2726
    %2743 = vst [vmem:[#allocation16 + $0x10] sm:$0xff] %v2727
    %2744 = vst [vmem:[#allocation16 + $0x18] sm:$0xff] %v2728
    %2745 = vst [vmem:[#allocation16 + $0x20] sm:$0xff] %v2729
    %2746 = vst [vmem:[#allocation16 + $0x28] sm:$0xff] %v2730
    %2747 = vst [vmem:[#allocation16 + $0x30] sm:$0xff] %v2731
    %2748 = vst [vmem:[#allocation16 + $0x38] sm:$0xff] %v2732
    %2749 = vst [vmem:[#allocation16 + $0x40] sm:$0xff] %v2733
    %2750 = vst [vmem:[#allocation16 + $0x48] sm:$0xff] %v2734
    %2751 = vst [vmem:[#allocation16 + $0x50] sm:$0xff] %v2735
    %2752 = vst [vmem:[#allocation16 + $0x58] sm:$0xff] %v2736
    %2753 = vst [vmem:[#allocation16 + $0x60] sm:$0xff] %v2737
    %2754 = vst [vmem:[#allocation16 + $0x68] sm:$0xff] %v2738
    %2755 = vst [vmem:[#allocation16 + $0x70] sm:$0xff] %v2739
    %2756 = vst [vmem:[#allocation16 + $0x78] sm:$0xff] %v2740
    // Predicated region
    $region78: #{tpu_custom_call.1} parent=1 // pred_check
      _
    $region79: #{tpu_custom_call.1} parent=1 // pred_check_branch
      %2758 = sbr.rel (0) target = $region81
    $region80: #{tpu_custom_call.1} parent=1 // pred_region
      %s2760 = ssub.s32 2048, 2048
      %2761 = vsyncadd [#allocation4], %s2760
      %s2762 = sshll.u32 [#allocation16], 4
      %s2763 = int_to_ptr.vmem [resolvable:$true] %s2762
      %2768 = dma.vmem_to_hbm [thread:$0]  %s2763, 2048, %s11, [#allocation4], 128, 128, 8
    $region81: #{tpu_custom_call.1} parent=1 // pred_fallthru
      _
    // Predicated region
    $region82: #{tpu_custom_call.1} parent=1 // pred_check
      _
    $region83: #{tpu_custom_call.1} parent=1 // pred_check_branch
      %2770 = sbr.rel (0) target = $region85
    $region84: #{tpu_custom_call.1} parent=1 // pred_region
      %2771 = dma.done [#allocation4], 2048
    $region85: #{tpu_custom_call.1} parent=1 // pred_fallthru
      _
    %2772 = vsyncpa [#allocation3], 1
    %2773 = vsyncpa [#allocation6], 1
    %2774 = vsyncpa [#allocation9], 1
    %2775 = vsyncpa [#allocation12], 1
    %2776 = vsyncpa [#allocation15], 1
    %2777 = vsyncpa [#allocation4], 1

</llo_original>
